<compile_context>
chip_gen: v7x
topology: tpu7x:2x2x1
jax: 0.10.0
libtpu: 0.0.40
codegen_flags: <defaults>
</compile_context>

<pallas_src>
import jax
import jax.numpy as jnp
from jax.experimental import pallas as pl
from jax.experimental.pallas import tpu as pltpu


# ---------------------------------------------------------------------------
# Encoder kernel: fused 3x3 conv + bias + ReLU + spatial GAP (channel-last)
# ---------------------------------------------------------------------------
def _conv_gap_kernel(x_ref, w_ref, b_ref, pmat_ref, feat_ref, pooled_ref):
    # x_ref    : (TN, H+2, (W+2)*Cin)   bf16  halo'd channel-last input tile
    # w_ref    : (3, (W+2)*Cin, W*Cout) bf16  banded block-Toeplitz conv weights (per ky)
    # b_ref    : (1, W*Cout)            f32   bias tiled over x
    # pmat_ref : (W*Cout, C_pad)        f32   pooling matrix (folds x into channels, /HW),
    #                                         lane-padded to C_pad=128
    # feat_ref : (TN, H, W*Cout)        f32   channel-last feature maps (lane-dense)
    # pooled_ref: (TN, C_pad)           f32   spatial mean of ReLU features (lane-dense)
    TN, Hp, WpC = x_ref.shape
    H = Hp - 2
    WCout = w_ref.shape[2]

    xv = x_ref[...]
    acc = jnp.zeros((TN * H, WCout), jnp.float32)
    for ky in range(3):  # static, unrolled
        lhs = xv[:, ky:ky + H, :].reshape(TN * H, WpC)          # bf16, lane dim unchanged
        acc += jnp.dot(lhs, w_ref[ky], preferred_element_type=jnp.float32)

    out = jnp.maximum(acc + b_ref[...], 0.0)                    # f32 epilogue (VPU)
    feat3 = out.reshape(TN, H, WCout)
    feat_ref[...] = feat3

    # fused GAP: sum over rows (XLU), then fold x into channels with a small matmul (MXU)
    row_sum = jnp.sum(feat3, axis=1)                            # (TN, W*Cout)
    pooled_ref[...] = jnp.dot(row_sum, pmat_ref[...],
                              preferred_element_type=jnp.float32)


def conv3x3_relu_gap(x_nchw, w_oihw, bias, *, tile_n=8):
    """3x3 'same' conv + bias + ReLU, channel-last features + fused spatial GAP.

    x_nchw: (N, Cin, H, W) f32,  w_oihw: (Cout, Cin, 3, 3),  bias: (Cout,)
    Returns (feat, pooled): feat (N, H, W, Cout) f32 channel-last, pooled (N, Cout) f32.
    """
    N, Cin, H, W = x_nchw.shape
    Cout = w_oihw.shape[0]
    Hp, Wp = H + 2, W + 2
    C_pad = max(128, pl.cdiv(Cout, 128) * 128)                    # lane-dense pooled store

    # --- tiny host-side setup (no feature-sized HBM expansion) -----------------
    x = jnp.transpose(x_nchw, (0, 2, 3, 1))                       # NHWC (input is small)
    xpad = jnp.pad(x, ((0, 0), (1, 1), (1, 1), (0, 0))).reshape(N, Hp, Wp * Cin)

    TN = tile_n
    N_pad = pl.cdiv(N, TN) * TN
    if N_pad != N:
        xpad = jnp.pad(xpad, ((0, N_pad - N), (0, 0), (0, 0)))
    xpad = xpad.astype(jnp.bfloat16)                              # bf16 DMA + MXU input

    # Banded block-Toeplitz weights: wk[ky, xx*Cin + c, x*Cout + co] = w[ky, xx-x, c, co]
    w = jnp.transpose(w_oihw, (2, 3, 1, 0))                       # (ky, kx, Cin, Cout)
    dx = jnp.arange(Wp)[:, None] - jnp.arange(W)[None, :]         # (Wp, W)
    valid = (dx >= 0) & (dx < 3)
    wk = jnp.where(valid[None, :, :, None, None], w[:, jnp.clip(dx, 0, 2)], 0.0)
    wk = jnp.transpose(wk, (0, 1, 3, 2, 4)).reshape(3, Wp * Cin, W * Cout)
    wk = wk.astype(jnp.bfloat16)

    bias_t = jnp.tile(bias, W).reshape(1, W * Cout).astype(jnp.float32)
    # Pooling matrix, lane-padded to C_pad columns (extra cols are zero -> harmless).
    pmat = jnp.tile(jnp.eye(Cout, dtype=jnp.float32), (W, 1)) / float(H * W)   # (W*Cout, Cout)
    pmat = jnp.pad(pmat, ((0, 0), (0, C_pad - Cout)))                          # (W*Cout, C_pad)

    feat, pooled = pl.pallas_call(
        _conv_gap_kernel,
        out_shape=(jax.ShapeDtypeStruct((N_pad, H, W * Cout), jnp.float32),
                   jax.ShapeDtypeStruct((N_pad, C_pad), jnp.float32)),
        grid=(N_pad // TN,),
        in_specs=[
            pl.BlockSpec((TN, Hp, Wp * Cin), lambda i: (i, 0, 0)),
            pl.BlockSpec((3, Wp * Cin, W * Cout), lambda i: (0, 0, 0)),
            pl.BlockSpec((1, W * Cout), lambda i: (0, 0)),
            pl.BlockSpec((W * Cout, C_pad), lambda i: (0, 0)),
        ],
        out_specs=(
            pl.BlockSpec((TN, H, W * Cout), lambda i: (i, 0, 0)),
            pl.BlockSpec((TN, C_pad), lambda i: (i, 0)),
        ),
        compiler_params=pltpu.CompilerParams(
            dimension_semantics=("parallel",),
            vmem_limit_bytes=32 * 1024 * 1024),
    )(xpad, wk, bias_t, pmat)

    feat = feat[:N].reshape(N, H, W, Cout)
    pooled = pooled[:N, :Cout]
    return feat, pooled


# ---------------------------------------------------------------------------
# Query head: ProtoNet metric on fused-GAP pooled features
# ---------------------------------------------------------------------------
def _protonet_kernel(sf_ref, qf_ref, ohn_ref, o_ref):
    # sf_ref: (1, s, D)  qf_ref: (1, q, D)  ohn_ref: (1, n_way, s)  count-normalized onehot
    # o_ref : (1, q, n_way)
    sf = sf_ref[0]
    qf = qf_ref[0]
    ohn = ohn_ref[0]
    proto = jnp.dot(ohn, sf, preferred_element_type=jnp.float32)  # (n_way, D) class means
    q2 = jnp.sum(qf * qf, axis=-1, keepdims=True)                 # (q, 1)
    p2 = jnp.sum(proto * proto, axis=-1)[None, :]                 # (1, n_way)
    qp = jax.lax.dot_general(qf, proto, (((1,), (1,)), ((), ())),
                             preferred_element_type=jnp.float32)  # (q, n_way)
    o_ref[0] = -(q2 + p2 - 2.0 * qp)                              # -||q - p||^2 logits


def protonet_query(support_pooled, support_y, query_pooled, n_way):
    """support_pooled: (b, s, C) f32, query_pooled: (b, q, C) f32, support_y: (b, s) int."""
    b, s, C = support_pooled.shape
    q = query_pooled.shape[1]
    onehot = jax.nn.one_hot(support_y, n_way, dtype=jnp.float32)    # (b, s, n_way)
    counts = jnp.maximum(jnp.sum(onehot, axis=1), 1.0)              # (b, n_way) guard empty
    onehot_n = jnp.transpose(onehot, (0, 2, 1)) / counts[..., None]  # (b, n_way, s), rows sum to 1

    return pl.pallas_call(
        _protonet_kernel,
        out_shape=jax.ShapeDtypeStruct((b, q, n_way), jnp.float32),
        grid=(b,),
        in_specs=[
            pl.BlockSpec((1, s, C), lambda i: (i, 0, 0)),
            pl.BlockSpec((1, q, C), lambda i: (i, 0, 0)),
            pl.BlockSpec((1, n_way, s), lambda i: (i, 0, 0)),
        ],
        out_specs=pl.BlockSpec((1, q, n_way), lambda i: (i, 0, 0)),
        compiler_params=pltpu.CompilerParams(dimension_semantics=("parallel",)),
    )(support_pooled, query_pooled, onehot_n)


# ---------------------------------------------------------------------------
# FSLQuery port
# ---------------------------------------------------------------------------
class FSLQueryPallas:
    """Port of FSLQuery with forward_encoding='FCN_R12' (forward_FCN path), eval mode.

    # TODO(synk): make_encoder / make_query / CPEA are not part of the provided source;
    # replaced with a Conv3x3+ReLU encoder (GAP fused in-kernel) and a ProtoNet metric head.
    """

    def __init__(self, in_channels=3, out_channels=32, n_way=2, k_shot=2, seed=0):
        self.forward_encoding = "FCN_R12"
        self.pyramid_list = self._parse_encoding_params()
        self.k_shot = k_shot
        self.n_way = n_way
        k0, k1 = jax.random.split(jax.random.PRNGKey(seed))
        fan_in = in_channels * 9
        self.conv_w = (jax.random.normal(k0, (out_channels, in_channels, 3, 3),
                                         dtype=jnp.float32) / jnp.sqrt(fan_in))
        self.conv_b = 0.01 * jax.random.normal(k1, (out_channels,), dtype=jnp.float32)

    def _parse_encoding_params(self):
        idx = self.forward_encoding.find('-')
        if idx < 0:
            return []
        return [int(s) for s in self.forward_encoding[idx + 1:].split(',')]

    def encoder(self, x):
        # channel-last feature maps + fused-GAP pooled features, one pallas_call
        return conv3x3_relu_gap(x, self.conv_w, self.conv_b)

    def forward_FCN(self, support_x, support_y, query_x, query_y):
        b, s, c, h, w = support_x.shape
        q = query_x.shape[1]
        # Single encoder call over concatenated support + query images.
        x_all = jnp.concatenate([support_x.reshape(-1, c, h, w),
                                 query_x.reshape(-1, c, h, w)], axis=0)
        feat, pooled = self.encoder(x_all)
        fh, fw, fc = feat.shape[-3:]
        # Features kept channel-last (b, n, H, W, C); pooled (b, n, C) feeds the query head.
        support_xf = (feat[:b * s].reshape(b, s, fh, fw, fc),
                      pooled[:b * s].reshape(b, s, fc))
        query_xf = (feat[b * s:].reshape(b, q, fh, fw, fc),
                    pooled[b * s:].reshape(b, q, fc))
        return support_xf, support_y, query_xf, query_y

    def forward_feature(self, support_x, support_y, query_x, query_y):
        if self.forward_encoding == 'FCN_R12':
            return self.forward_FCN(support_x, support_y, query_x, query_y)
        raise NotImplementedError

    def __call__(self, support_x, support_y, query_x, query_y):
        support_xf, support_y, query_xf, query_y = self.forward_feature(
            support_x, support_y, query_x, query_y)
        # query head consumes the fused spatial-GAP features
        query = protonet_query(support_xf[1], support_y, query_xf[1], self.n_way)
        # eval mode: FSLQuery.forward returns `query` directly
        return query


if __name__ == "__main__":
    key = jax.random.PRNGKey(0)
    b, n_way, k_shot, n_query = 2, 2, 2, 4
    s = n_way * k_shot
    c, h, w = 3, 16, 16

    k_sx, k_qx = jax.random.split(key)
    support_x = jax.random.normal(k_sx, (b, s, c, h, w), dtype=jnp.float32)
    query_x = jax.random.normal(k_qx, (b, n_query, c, h, w), dtype=jnp.float32)
    support_y = jnp.tile(jnp.repeat(jnp.arange(n_way), k_shot)[None, :], (b, 1))
    query_y = jnp.tile(jnp.tile(jnp.arange(n_way), n_query // n_way)[None, :], (b, 1))

    model = FSLQueryPallas(in_channels=c, out_channels=32, n_way=n_way, k_shot=k_shot)
    logits = model(support_x, support_y, query_x, query_y)
    jax.block_until_ready(logits)

    assert logits.shape == (b, n_query, n_way)
    assert bool(jnp.all(jnp.isfinite(logits)))
    print("KERNEL_OK")
</pallas_src>

<mosaic_0001>
module attributes {stable_mosaic.version = 11 : i64} {
  func.func @_conv_gap_kernel(%arg0: i32, %arg1: memref<8x18x54xbf16, #tpu.memory_space<vmem>>, %arg2: memref<3x54x512xbf16, #tpu.memory_space<vmem>>, %arg3: memref<1x512xf32, #tpu.memory_space<vmem>>, %arg4: memref<512x128xf32, #tpu.memory_space<vmem>>, %arg5: memref<8x16x512xf32, #tpu.memory_space<vmem>>, %arg6: memref<8x128xf32, #tpu.memory_space<vmem>>) attributes {dimension_semantics = [#tpu.dimension_semantics<parallel>], iteration_bounds = array<i64: 2>, scalar_prefetch = 0 : i64, scratch_operands = 0 : i64, tpu.core_type = #tpu.core_type<tc>, window_params = [{transform_indices = @transform_0, window_bounds = array<i64: 8, 18, 54>}, {pipeline_mode = #tpu.pipeline_mode<synchronous>, transform_indices = @transform_1, window_bounds = array<i64: 3, 54, 512>}, {pipeline_mode = #tpu.pipeline_mode<synchronous>, transform_indices = @transform_2, window_bounds = array<i64: 1, 512>}, {pipeline_mode = #tpu.pipeline_mode<synchronous>, transform_indices = @transform_3, window_bounds = array<i64: 512, 128>}, {transform_indices = @transform_4, window_bounds = array<i64: 8, 16, 512>}, {transform_indices = @transform_5, window_bounds = array<i64: 8, 128>}]} {
    %c0 = arith.constant 0 : index
    %c0_0 = arith.constant 0 : index
    %c0_1 = arith.constant 0 : index
    %0 = vector.load %arg1[%c0, %c0_0, %c0_1] : memref<8x18x54xbf16, #tpu.memory_space<vmem>>, vector<8x18x54xbf16>
    %cst = arith.constant 0.000000e+00 : f32
    %1 = vector.broadcast %cst : f32 to vector<128x512xf32>
    %2 = vector.extract_strided_slice %0 {offsets = [0, 0, 0], sizes = [8, 16, 54], strides = [1, 1, 1]} : vector<8x18x54xbf16> to vector<8x16x54xbf16>
    %3 = vector.shape_cast %2 : vector<8x16x54xbf16> to vector<128x54xbf16>
    %c0_2 = arith.constant 0 : index
    %c0_3 = arith.constant 0 : index
    %c0_4 = arith.constant 0 : index
    %4 = vector.load %arg2[%c0_2, %c0_3, %c0_4] : memref<3x54x512xbf16, #tpu.memory_space<vmem>>, vector<1x54x512xbf16>
    %5 = vector.shape_cast %4 : vector<1x54x512xbf16> to vector<54x512xbf16>
    %cst_5 = arith.constant dense<0.000000e+00> : vector<128x512xf32>
    %6 = tpu.matmul %3, %5, %cst_5 {dimension_numbers = #tpu.dot_dimension_numbers<[1], [0], [0], [1], [0, 0, 1, 1], [], []>} : vector<128x54xbf16>, vector<54x512xbf16>, vector<128x512xf32> -> vector<128x512xf32>
    %7 = arith.addf %1, %6 : vector<128x512xf32>
    %8 = vector.extract_strided_slice %0 {offsets = [0, 1, 0], sizes = [8, 16, 54], strides = [1, 1, 1]} : vector<8x18x54xbf16> to vector<8x16x54xbf16>
    %9 = vector.shape_cast %8 : vector<8x16x54xbf16> to vector<128x54xbf16>
    %c1 = arith.constant 1 : index
    %c0_6 = arith.constant 0 : index
    %c0_7 = arith.constant 0 : index
    %10 = vector.load %arg2[%c1, %c0_6, %c0_7] : memref<3x54x512xbf16, #tpu.memory_space<vmem>>, vector<1x54x512xbf16>
    %11 = vector.shape_cast %10 : vector<1x54x512xbf16> to vector<54x512xbf16>
    %cst_8 = arith.constant dense<0.000000e+00> : vector<128x512xf32>
    %12 = tpu.matmul %9, %11, %cst_8 {dimension_numbers = #tpu.dot_dimension_numbers<[1], [0], [0], [1], [0, 0, 1, 1], [], []>} : vector<128x54xbf16>, vector<54x512xbf16>, vector<128x512xf32> -> vector<128x512xf32>
    %13 = arith.addf %7, %12 : vector<128x512xf32>
    %14 = vector.extract_strided_slice %0 {offsets = [0, 2, 0], sizes = [8, 16, 54], strides = [1, 1, 1]} : vector<8x18x54xbf16> to vector<8x16x54xbf16>
    %15 = vector.shape_cast %14 : vector<8x16x54xbf16> to vector<128x54xbf16>
    %c2 = arith.constant 2 : index
    %c0_9 = arith.constant 0 : index
    %c0_10 = arith.constant 0 : index
    %16 = vector.load %arg2[%c2, %c0_9, %c0_10] : memref<3x54x512xbf16, #tpu.memory_space<vmem>>, vector<1x54x512xbf16>
    %17 = vector.shape_cast %16 : vector<1x54x512xbf16> to vector<54x512xbf16>
    %cst_11 = arith.constant dense<0.000000e+00> : vector<128x512xf32>
    %18 = tpu.matmul %15, %17, %cst_11 {dimension_numbers = #tpu.dot_dimension_numbers<[1], [0], [0], [1], [0, 0, 1, 1], [], []>} : vector<128x54xbf16>, vector<54x512xbf16>, vector<128x512xf32> -> vector<128x512xf32>
    %19 = arith.addf %13, %18 : vector<128x512xf32>
    %c0_12 = arith.constant 0 : index
    %c0_13 = arith.constant 0 : index
    %20 = vector.load %arg3[%c0_12, %c0_13] : memref<1x512xf32, #tpu.memory_space<vmem>>, vector<1x512xf32>
    %21 = vector.broadcast %20 : vector<1x512xf32> to vector<128x512xf32>
    %22 = arith.addf %19, %21 : vector<128x512xf32>
    %cst_14 = arith.constant 0.000000e+00 : f32
    %23 = vector.broadcast %cst_14 : f32 to vector<128x512xf32>
    %24 = arith.maximumf %22, %23 : vector<128x512xf32>
    %25 = vector.shape_cast %24 : vector<128x512xf32> to vector<8x16x512xf32>
    %c0_15 = arith.constant 0 : index
    %c0_16 = arith.constant 0 : index
    %c0_17 = arith.constant 0 : index
    %26 = vector.load %arg5[%c0_15, %c0_16, %c0_17] : memref<8x16x512xf32, #tpu.memory_space<vmem>>, vector<8x16x512xf32>
    tpu.vector_store %arg5[%c0_15, %c0_16, %c0_17], %25 {strides = array<i32>} : memref<8x16x512xf32, #tpu.memory_space<vmem>>, vector<8x16x512xf32>,
    %cst_18 = arith.constant dense<0.000000e+00> : vector<8x512xf32>
    %27 = vector.multi_reduction <add>, %25, %cst_18 [1] : vector<8x16x512xf32> to vector<8x512xf32>
    %c0_19 = arith.constant 0 : index
    %c0_20 = arith.constant 0 : index
    %28 = vector.load %arg4[%c0_19, %c0_20] : memref<512x128xf32, #tpu.memory_space<vmem>>, vector<512x128xf32>
    %cst_21 = arith.constant dense<0.000000e+00> : vector<8x128xf32>
    %29 = tpu.matmul %27, %28, %cst_21 {dimension_numbers = #tpu.dot_dimension_numbers<[1], [0], [0], [1], [0, 0, 1, 1], [], []>} : vector<8x512xf32>, vector<512x128xf32>, vector<8x128xf32> -> vector<8x128xf32>
    %c0_22 = arith.constant 0 : index
    %c0_23 = arith.constant 0 : index
    %30 = vector.load %arg6[%c0_22, %c0_23] : memref<8x128xf32, #tpu.memory_space<vmem>>, vector<8x128xf32>
    tpu.vector_store %arg6[%c0_22, %c0_23], %29 {strides = array<i32>} : memref<8x128xf32, #tpu.memory_space<vmem>>, vector<8x128xf32>,
    return
  }
  func.func @transform_0(%arg0: i32) -> (i32, i32, i32) {
    %c0_i32 = arith.constant 0 : i32
    %c0_i32_0 = arith.constant 0 : i32
    %c0_i32_1 = arith.constant 0 : i32
    return %arg0, %c0_i32, %c0_i32_0 : i32, i32, i32
  }
  func.func @transform_1(%arg0: i32) -> (i32, i32, i32) {
    %c0_i32 = arith.constant 0 : i32
    %c0_i32_0 = arith.constant 0 : i32
    %c0_i32_1 = arith.constant 0 : i32
    %c0_i32_2 = arith.constant 0 : i32
    return %c0_i32, %c0_i32_0, %c0_i32_1 : i32, i32, i32
  }
  func.func @transform_2(%arg0: i32) -> (i32, i32) {
    %c0_i32 = arith.constant 0 : i32
    %c0_i32_0 = arith.constant 0 : i32
    %c0_i32_1 = arith.constant 0 : i32
    return %c0_i32, %c0_i32_0 : i32, i32
  }
  func.func @transform_3(%arg0: i32) -> (i32, i32) {
    %c0_i32 = arith.constant 0 : i32
    %c0_i32_0 = arith.constant 0 : i32
    %c0_i32_1 = arith.constant 0 : i32
    return %c0_i32, %c0_i32_0 : i32, i32
  }
  func.func @transform_4(%arg0: i32) -> (i32, i32, i32) {
    %c0_i32 = arith.constant 0 : i32
    %c0_i32_0 = arith.constant 0 : i32
    %c0_i32_1 = arith.constant 0 : i32
    return %arg0, %c0_i32, %c0_i32_0 : i32, i32, i32
  }
  func.func @transform_5(%arg0: i32) -> (i32, i32) {
    %c0_i32 = arith.constant 0 : i32
    %c0_i32_0 = arith.constant 0 : i32
    return %arg0, %c0_i32 : i32, i32
  }
}

</mosaic_0001>

<llo_original>
// kernel: tpu_custom_call.1
$region0: #{tpu_custom_call.1}
  #allocation0 [shape = 'u32[]', space=smem, size = 0x4, offset = 0x4, fixed_abs, tag = 'smem constant byte address 0x4 - core index']
  #allocation1 [shape = 'u32[144,128]{1,0:T(1,128)}', space=vmem, size = 0x12000, scoped, tag = 'internal scratch']
  %s0 = inlined_call_operand.vmem [shape: bf16[16,18,54], index: 0, kind: input, shape index: {}]
  %s1 = inlined_call_operand.vmem [shape: bf16[3,54,512], index: 1, kind: input, shape index: {}]
  %s2 = inlined_call_operand.vmem [shape: f32[1,512], index: 2, kind: input, shape index: {}]
  %s3 = inlined_call_operand.hbm [shape: f32[512,128], index: 3, kind: input, shape index: {}]
  %s4 = inlined_call_operand.hbm [shape: f32[16,16,512], index: 4, kind: output, shape index: {0}]
  %s5 = inlined_call_operand.hbm [shape: f32[16,128], index: 5, kind: output, shape index: {1}]
  %6 = xla_tuple %s4, %s5
  %s7 = sld [smem:[#allocation0]]
  $region61: #{tpu_custom_call.1} parent=0
    _
  %s9 = ssub.s32 1, %s7
  %s10 = scalar_select 0, %s9, %s7
  $region1: #{tpu_custom_call.1} parent=0
    #allocation2 [shape = 'u8[262144]{0}', space=vmem, size = 0x40000, scoped, tag = 'input window, operand 3, single buffered']
    #allocation3 [shape = 's32[2]{0}', space=sflag, size = 0x8, scoped, tag = 'scoped memory for tpu_custom_call.1']
    #allocation4 [shape = 's32[2]{0}', space=sflag, size = 0x8, scoped, tag = 'scoped memory for tpu_custom_call.1']
    #allocation5 [shape = 'u8[524288]{0}', space=vmem, size = 0x80000, scoped, tag = 'output window, operand 0']
    #allocation6 [shape = 'u8[8192]{0}', space=vmem, size = 0x2000, scoped, tag = 'output window, operand 1']
    #allocation7 [shape = 's32[2]{0}', space=sflag, size = 0x8, scoped, tag = 'scoped memory for tpu_custom_call.1']
    %11 = vsyncpa [#allocation3], 0
    %12 = vsyncpa [#allocation4], 0
    %s13 = scalar_lea.sflag [#allocation4], 1
    %14 = vsyncpa %s13, 0
    %15 = vsyncpa [#allocation7], 0
    %s16 = scalar_lea.sflag [#allocation7], 1
    %17 = vsyncpa %s16, 0
    loop: start=0, step=1, limit=4
    $region2: #{tpu_custom_call.1} parent=1 // loop_pre_header
      _
    $region3: #{tpu_custom_call.1} parent=1 // loop_header
      %s19 = sphi 0, %s23
      %p20 = scmp.ge.s32.totalorder %s19, 4
      %s29 = sphi 0, %s31
      %s32 = sphi 0, %s29
      %s33 = sphi 0, %s32
      %s49 = sphi 0, %s33
      %s53 = sphi 0, %s53
      %s55 = sphi 0, %s53
      %s56 = sphi 0, %s55
      %s70 = sphi 0, %s56
      %s74 = sphi 0, %s74
      %s76 = sphi 0, %s74
      %s77 = sphi 0, %s76
      %s91 = sphi 0, %s77
      %s95 = sphi 0, %s95
      %s97 = sphi 0, %s95
      %s98 = sphi 0, %s97
      %s112 = sphi 0, %s98
      %s118 = sphi 0, %s120
      %s121 = sphi 0, %s118
      %s122 = sphi 0, %s121
      %s138 = sphi 0, %s122
      %s144 = sphi 0, %s146
      %s147 = sphi 0, %s144
      %s148 = sphi 0, %s147
      %s164 = sphi 0, %s148
    $region4: #{tpu_custom_call.1} parent=1 // loop_header_branch
      %22 = sbr.rel (%p20) target = $region8
    $region5: #{tpu_custom_call.1} parent=1 // loop_body
      %s24 = ssub.s32 %s19, 1
      %s25 = ssub.s32 %s19, 2
      %s26 = sadd.s32 %s19, 1
      %s27 = ssub.s32 %s19, %s26
      %p28 = scmp.eq.s32.totalorder %s27, 0
      %s30 = sadd.s32 %s29, 1
      %s31 = scalar_select %p28, %s29, %s30
      %p34 = pneg %p28
      %p35 = scmp.eq.s32.totalorder %s19, 1
      %p36 = por %p34, %p35
      %p37 = scmp.ne.s32.totalorder %s29, %s32
      %p38 = scmp.eq.s32.totalorder %s19, 0
      %p39 = por %p37, %p38
      %p40 = scmp.ne.s32.totalorder %s29, %s32
      %p41 = scmp.eq.s32.totalorder %s24, 1
      %p42 = por %p40, %p41
      %p43 = scmp.ne.s32.totalorder %s32, %s33
      %p44 = scmp.eq.s32.totalorder %s24, 0
      %p45 = por %p43, %p44
      %p46 = scmp.ne.s32.totalorder %s32, %s33
      %p47 = scmp.eq.s32.totalorder %s25, 1
      %p48 = por %p46, %p47
      %p50 = scmp.ne.s32.totalorder %s33, %s49
      %p51 = scmp.eq.s32.totalorder %s25, 0
      %p52 = por %p50, %p51
      %s54 = sadd.s32 %s53, 1
      %p57 = scmp.eq.s32.totalorder %s19, 1
      %p58 = scmp.ne.s32.totalorder %s53, %s55
      %p59 = scmp.eq.s32.totalorder %s19, 0
      %p60 = por %p58, %p59
      %p61 = scmp.ne.s32.totalorder %s53, %s55
      %p62 = scmp.eq.s32.totalorder %s24, 1
      %p63 = por %p61, %p62
      %p64 = scmp.ne.s32.totalorder %s55, %s56
      %p65 = scmp.eq.s32.totalorder %s24, 0
      %p66 = por %p64, %p65
      %p67 = scmp.ne.s32.totalorder %s55, %s56
      %p68 = scmp.eq.s32.totalorder %s25, 1
      %p69 = por %p67, %p68
      %p71 = scmp.ne.s32.totalorder %s56, %s70
      %p72 = scmp.eq.s32.totalorder %s25, 0
      %p73 = por %p71, %p72
      %s75 = sadd.s32 %s74, 1
      %p78 = scmp.eq.s32.totalorder %s19, 1
      %p79 = scmp.ne.s32.totalorder %s74, %s76
      %p80 = scmp.eq.s32.totalorder %s19, 0
      %p81 = por %p79, %p80
      %p82 = scmp.ne.s32.totalorder %s74, %s76
      %p83 = scmp.eq.s32.totalorder %s24, 1
      %p84 = por %p82, %p83
      %p85 = scmp.ne.s32.totalorder %s76, %s77
      %p86 = scmp.eq.s32.totalorder %s24, 0
      %p87 = por %p85, %p86
      %p88 = scmp.ne.s32.totalorder %s76, %s77
      %p89 = scmp.eq.s32.totalorder %s25, 1
      %p90 = por %p88, %p89
      %p92 = scmp.ne.s32.totalorder %s77, %s91
      %p93 = scmp.eq.s32.totalorder %s25, 0
      %p94 = por %p92, %p93
      %s96 = sadd.s32 %s95, 1
      %p99 = scmp.eq.s32.totalorder %s19, 1
      %p100 = scmp.ne.s32.totalorder %s95, %s97
      %p101 = scmp.eq.s32.totalorder %s19, 0
      %p102 = por %p100, %p101
      %p103 = scmp.ne.s32.totalorder %s95, %s97
      %p104 = scmp.eq.s32.totalorder %s24, 1
      %p105 = por %p103, %p104
      %p106 = scmp.ne.s32.totalorder %s97, %s98
      %p107 = scmp.eq.s32.totalorder %s24, 0
      %p108 = por %p106, %p107
      %p109 = scmp.ne.s32.totalorder %s97, %s98
      %p110 = scmp.eq.s32.totalorder %s25, 1
      %p111 = por %p109, %p110
      %p113 = scmp.ne.s32.totalorder %s98, %s112
      %p114 = scmp.eq.s32.totalorder %s25, 0
      %p115 = por %p113, %p114
      %s116 = ssub.s32 %s19, %s26
      %p117 = scmp.eq.s32.totalorder %s116, 0
      %s119 = sadd.s32 %s118, 1
      %s120 = scalar_select %p117, %s118, %s119
      %p123 = pneg %p117
      %p124 = scmp.eq.s32.totalorder %s19, 1
      %p125 = por %p123, %p124
      %p126 = scmp.ne.s32.totalorder %s118, %s121
      %p127 = scmp.eq.s32.totalorder %s19, 0
      %p128 = por %p126, %p127
      %p129 = scmp.ne.s32.totalorder %s118, %s121
      %p130 = scmp.eq.s32.totalorder %s24, 1
      %p131 = por %p129, %p130
      %p132 = scmp.ne.s32.totalorder %s121, %s122
      %p133 = scmp.eq.s32.totalorder %s24, 0
      %p134 = por %p132, %p133
      %p135 = scmp.ne.s32.totalorder %s121, %s122
      %p136 = scmp.eq.s32.totalorder %s25, 1
      %p137 = por %p135, %p136
      %p139 = scmp.ne.s32.totalorder %s122, %s138
      %p140 = scmp.eq.s32.totalorder %s25, 0
      %p141 = por %p139, %p140
      %s142 = ssub.s32 %s19, %s26
      %p143 = scmp.eq.s32.totalorder %s142, 0
      %s145 = sadd.s32 %s144, 1
      %s146 = scalar_select %p143, %s144, %s145
      %p149 = pneg %p143
      %p150 = scmp.eq.s32.totalorder %s19, 1
      %p151 = por %p149, %p150
      %p152 = scmp.ne.s32.totalorder %s144, %s147
      %p153 = scmp.eq.s32.totalorder %s19, 0
      %p154 = por %p152, %p153
      %p155 = scmp.ne.s32.totalorder %s144, %s147
      %p156 = scmp.eq.s32.totalorder %s24, 1
      %p157 = por %p155, %p156
      %p158 = scmp.ne.s32.totalorder %s147, %s148
      %p159 = scmp.eq.s32.totalorder %s24, 0
      %p160 = por %p158, %p159
      %p161 = scmp.ne.s32.totalorder %s147, %s148
      %p162 = scmp.eq.s32.totalorder %s25, 1
      %p163 = por %p161, %p162
      %p165 = scmp.ne.s32.totalorder %s148, %s164
      %p166 = scmp.eq.s32.totalorder %s25, 0
      %p167 = por %p165, %p166
      %p168 = scmp.le.s32.totalorder 1, %s19
      %p169 = scmp.lt.s32.totalorder %s19, 3
      %p170 = pnand %p168, %p169
      %p171 = pneg %p170
      // Predicated region
      $region9: #{tpu_custom_call.1} parent=5 // pred_check
        _
      $region10: #{tpu_custom_call.1} parent=5 // pred_check_branch
        %173 = sbr.rel (%p170) target = $region12
      $region11: #{tpu_custom_call.1} parent=5 // pred_region
        %s174 = ssub.s32 %s19, 1
        // Predicated region
        $region13: #{tpu_custom_call.1} parent=11 // pred_check
          %p175 = pneg %p66
        $region14: #{tpu_custom_call.1} parent=11 // pred_check_branch
          %177 = sbr.rel (%p175) target = $region16
        $region15: #{tpu_custom_call.1} parent=11 // pred_region
          _
        $region16: #{tpu_custom_call.1} parent=11 // pred_fallthru
          _
        // Predicated region
        $region17: #{tpu_custom_call.1} parent=11 // pred_check
          %p178 = pneg %p87
        $region18: #{tpu_custom_call.1} parent=11 // pred_check_branch
          %180 = sbr.rel (%p178) target = $region20
        $region19: #{tpu_custom_call.1} parent=11 // pred_region
          _
        $region20: #{tpu_custom_call.1} parent=11 // pred_fallthru
          _
        // Predicated region
        $region21: #{tpu_custom_call.1} parent=11 // pred_check
          %p181 = pneg %p108
        $region22: #{tpu_custom_call.1} parent=11 // pred_check_branch
          %183 = sbr.rel (%p181) target = $region24
        $region23: #{tpu_custom_call.1} parent=11 // pred_region
          %s185 = ssub.s32 8192, 8192
          %186 = vsyncadd [#allocation3], %s185
          %s187 = sshll.u32 [#allocation2], 4
          %s188 = int_to_ptr.vmem [resolvable:$true] %s187
          %193 = dma.hbm_to_vmem [thread:$0]  %s3, 8192, %s188, [#allocation3], 128, 128, 8
        $region24: #{tpu_custom_call.1} parent=11 // pred_fallthru
          _
      $region12: #{tpu_custom_call.1} parent=5 // pred_fallthru
        _
      %p194 = scmp.lt.s32.totalorder %s19, 2
      // Predicated region
      $region25: #{tpu_custom_call.1} parent=5 // pred_check
        %p195 = pneg %p194
      $region26: #{tpu_custom_call.1} parent=5 // pred_check_branch
        %197 = sbr.rel (%p195) target = $region28
      $region27: #{tpu_custom_call.1} parent=5 // pred_region
        // Predicated region
        $region29: #{tpu_custom_call.1} parent=27 // pred_check
          %p198 = pneg %p39
        $region30: #{tpu_custom_call.1} parent=27 // pred_check_branch
          %200 = sbr.rel (%p198) target = $region32
        $region31: #{tpu_custom_call.1} parent=27 // pred_region
          %s201 = smul.u32 8, %s19
          %p202 = scmp.lt.s32.totalorder %s201, 15
          %s203 = scalar_select %p202, %s201, 15
          %s204 = smul.addr %s203, 3
          %s205 = smul.addr %s204, 4
          %s206 = scalar_lea.vmem %s0, %s205
          %s207 = smul.u32 8, %s19
        $region32: #{tpu_custom_call.1} parent=27 // pred_fallthru
          _
      $region28: #{tpu_custom_call.1} parent=5 // pred_fallthru
        _
      %p208 = scmp.le.s32.totalorder 1, %s19
      %p209 = scmp.lt.s32.totalorder %s19, 3
      %p210 = pnand %p208, %p209
      %p211 = pneg %p210
      // Predicated region
      $region33: #{tpu_custom_call.1} parent=5 // pred_check
        _
      $region34: #{tpu_custom_call.1} parent=5 // pred_check_branch
        %213 = sbr.rel (%p210) target = $region36
      $region35: #{tpu_custom_call.1} parent=5 // pred_region
        %s214 = ssub.s32 %s19, 1
        // Predicated region
        $region37: #{tpu_custom_call.1} parent=35 // pred_check
          %p215 = pneg %p108
        $region38: #{tpu_custom_call.1} parent=35 // pred_check_branch
          %217 = sbr.rel (%p215) target = $region40
        $region39: #{tpu_custom_call.1} parent=35 // pred_region
          %218 = dma.done [#allocation3], 8192
        $region40: #{tpu_custom_call.1} parent=35 // pred_fallthru
          _
        %s219 = smul.u32 8, %s24
        %p220 = scmp.lt.s32.totalorder %s219, 15
        %s221 = scalar_select %p220, %s219, 15
        %s222 = smul.addr %s221, 3
        %s223 = smul.addr %s222, 4
        %s224 = scalar_lea.vmem %s0, %s223
        %p225 = pneg %p45
        %p226 = pneg %p42
        %p227 = pneg %p66
        %p228 = pneg %p63
        %p229 = pneg %p87
        %p230 = pneg %p84
        %p231 = pneg %p108
        %p232 = pneg %p105
        %p233 = pneg %p134
        %p234 = pneg %p131
        %s235 = sand.u32 %s121, 1
        %s236 = scalar_lea.sflag [#allocation4], %s235
        %s237 = sand.u32 %s121, 1
        %s238 = smul.addr %s237, 512
        %s239 = scalar_lea.vmem [#allocation5], %s238
        %p240 = pneg %p160
        %p241 = pneg %p157
        %s242 = sand.u32 %s147, 1
        %s243 = scalar_lea.sflag [#allocation7], %s242
        %s244 = sand.u32 %s147, 1
        %s245 = smul.addr %s244, 8
        %s246 = scalar_lea.vmem [#allocation6], %s245
        %s247 = smul.u32 8, %s24
        %p248 = scmp.lt.s32.totalorder %s247, 15
        %s249 = scalar_select %p248, %s247, 15
        %s250 = smul.addr %s249, 3
        %s251 = smul.addr %s250, 4
        %s252 = scalar_lea.vmem %s0, %s251
        %s253 = smul.u32 8, %s24
        %s254 = smul.u32 8, %s24
        %v256 = vld [vmem:[%s252] sm:$0xf]
        %v257 = vld [vmem:[%s252 + $0x4] sm:$0xf]
        %v258 = vld [vmem:[%s252 + $0x8] sm:$0x1]
        %v259 = vld [vmem:[%s252 + $0xc] sm:$0xf]
        %v260 = vld [vmem:[%s252 + $0x10] sm:$0xf]
        %v261 = vld [vmem:[%s252 + $0x14] sm:$0x1]
        %v262 = vld [vmem:[%s252 + $0x18] sm:$0xf]
        %v263 = vld [vmem:[%s252 + $0x1c] sm:$0xf]
        %v264 = vld [vmem:[%s252 + $0x20] sm:$0x1]
        %v265 = vld [vmem:[%s252 + $0x24] sm:$0xf]
        %v266 = vld [vmem:[%s252 + $0x28] sm:$0xf]
        %v267 = vld [vmem:[%s252 + $0x2c] sm:$0x1]
        %v268 = vld [vmem:[%s252 + $0x30] sm:$0xf]
        %v269 = vld [vmem:[%s252 + $0x34] sm:$0xf]
        %v270 = vld [vmem:[%s252 + $0x38] sm:$0x1]
        %v271 = vld [vmem:[%s252 + $0x3c] sm:$0xf]
        %v272 = vld [vmem:[%s252 + $0x40] sm:$0xf]
        %v273 = vld [vmem:[%s252 + $0x44] sm:$0x1]
        %v274 = vld [vmem:[%s252 + $0x48] sm:$0xf]
        %v275 = vld [vmem:[%s252 + $0x4c] sm:$0xf]
        %v276 = vld [vmem:[%s252 + $0x50] sm:$0x1]
        %v277 = vld [vmem:[%s252 + $0x54] sm:$0xf]
        %v278 = vld [vmem:[%s252 + $0x58] sm:$0xf]
        %v279 = vld [vmem:[%s252 + $0x5c] sm:$0x1]
        %v280 = vld [vmem:[%s1] sm:$0xff]
        %v281 = vld [vmem:[%s1 + $0x8] sm:$0xff]
        %v282 = vld [vmem:[%s1 + $0x10] sm:$0xff]
        %v283 = vld [vmem:[%s1 + $0x18] sm:$0xff]
        %v284 = vld [vmem:[%s1 + $0x20] sm:$0xff]
        %v285 = vld [vmem:[%s1 + $0x28] sm:$0xff]
        %v286 = vld [vmem:[%s1 + $0x30] sm:$0xff]
        %v287 = vld [vmem:[%s1 + $0x38] sm:$0xff]
        %v288 = vld [vmem:[%s1 + $0x40] sm:$0xff]
        %v289 = vld [vmem:[%s1 + $0x48] sm:$0xff]
        %v290 = vld [vmem:[%s1 + $0x50] sm:$0xff]
        %v291 = vld [vmem:[%s1 + $0x58] sm:$0xff]
        %v292 = vld [vmem:[%s1 + $0x60] sm:$0x77]
        %v293 = vld [vmem:[%s1 + $0x68] sm:$0x77]
        %vm294 = vsmask.f32 3328
        %vm295 = vsmask.f32 7440
        %vm296 = vmor %vm294, %vm295
        %v298 = vshrl.u32 %v256, 16
        %v300 = vrot.slane %v298, 4
        %v301 = vshll.u32 %v256, 16
        %v303 = vrot.slane %v301, 5
        %v304 = vor.u32 %v300, %v303
        %v305 = vrot.slane %v304, 4
        %v307 = vshll.u32 %v257, 16
        %v309 = vrot.slane %v307, 5
        %v310 = vsel %vm296, %v305, %v309
        %v311 = vshrl.u32 %v257, 16
        %v313 = vrot.slane %v311, 4
        %v314 = vor.u32 %v313, %v309
        %v315 = vrot.slane %v314, 4
        %v317 = vshll.u32 %v258, 16
        %v319 = vrot.slane %v317, 5
        %v320 = vsel %vm296, %v315, %v319
        %v322 = vshrl.u32 %v259, 16
        %v324 = vrot.slane %v322, 4
        %v325 = vshll.u32 %v259, 16
        %v327 = vrot.slane %v325, 5
        %v328 = vor.u32 %v324, %v327
        %v329 = vrot.slane %v328, 4
        %v331 = vshll.u32 %v260, 16
        %v333 = vrot.slane %v331, 5
        %v334 = vsel %vm296, %v329, %v333
        %v335 = vshrl.u32 %v260, 16
        %v337 = vrot.slane %v335, 4
        %v338 = vor.u32 %v337, %v333
        %v339 = vrot.slane %v338, 4
        %v341 = vshll.u32 %v261, 16
        %v343 = vrot.slane %v341, 5
        %v344 = vsel %vm296, %v339, %v343
        %v346 = vshrl.u32 %v262, 16
        %v348 = vrot.slane %v346, 4
        %v349 = vshll.u32 %v262, 16
        %v351 = vrot.slane %v349, 5
        %v352 = vor.u32 %v348, %v351
        %v353 = vrot.slane %v352, 4
        %v355 = vshll.u32 %v263, 16
        %v357 = vrot.slane %v355, 5
        %v358 = vsel %vm296, %v353, %v357
        %v359 = vshrl.u32 %v263, 16
        %v361 = vrot.slane %v359, 4
        %v362 = vor.u32 %v361, %v357
        %v363 = vrot.slane %v362, 4
        %v365 = vshll.u32 %v264, 16
        %v367 = vrot.slane %v365, 5
        %v368 = vsel %vm296, %v363, %v367
        %v370 = vshrl.u32 %v265, 16
        %v372 = vrot.slane %v370, 4
        %v373 = vshll.u32 %v265, 16
        %v375 = vrot.slane %v373, 5
        %v376 = vor.u32 %v372, %v375
        %v377 = vrot.slane %v376, 4
        %v379 = vshll.u32 %v266, 16
        %v381 = vrot.slane %v379, 5
        %v382 = vsel %vm296, %v377, %v381
        %v383 = vshrl.u32 %v266, 16
        %v385 = vrot.slane %v383, 4
        %v386 = vor.u32 %v385, %v381
        %v387 = vrot.slane %v386, 4
        %v389 = vshll.u32 %v267, 16
        %v391 = vrot.slane %v389, 5
        %v392 = vsel %vm296, %v387, %v391
        %v394 = vshrl.u32 %v268, 16
        %v396 = vrot.slane %v394, 4
        %v397 = vshll.u32 %v268, 16
        %v399 = vrot.slane %v397, 5
        %v400 = vor.u32 %v396, %v399
        %v401 = vrot.slane %v400, 4
        %v403 = vshll.u32 %v269, 16
        %v405 = vrot.slane %v403, 5
        %v406 = vsel %vm296, %v401, %v405
        %v407 = vshrl.u32 %v269, 16
        %v409 = vrot.slane %v407, 4
        %v410 = vor.u32 %v409, %v405
        %v411 = vrot.slane %v410, 4
        %v413 = vshll.u32 %v270, 16
        %v415 = vrot.slane %v413, 5
        %v416 = vsel %vm296, %v411, %v415
        %v418 = vshrl.u32 %v271, 16
        %v420 = vrot.slane %v418, 4
        %v421 = vshll.u32 %v271, 16
        %v423 = vrot.slane %v421, 5
        %v424 = vor.u32 %v420, %v423
        %v425 = vrot.slane %v424, 4
        %v427 = vshll.u32 %v272, 16
        %v429 = vrot.slane %v427, 5
        %v430 = vsel %vm296, %v425, %v429
        %v431 = vshrl.u32 %v272, 16
        %v433 = vrot.slane %v431, 4
        %v434 = vor.u32 %v433, %v429
        %v435 = vrot.slane %v434, 4
        %v437 = vshll.u32 %v273, 16
        %v439 = vrot.slane %v437, 5
        %v440 = vsel %vm296, %v435, %v439
        %v442 = vshrl.u32 %v274, 16
        %v444 = vrot.slane %v442, 4
        %v445 = vshll.u32 %v274, 16
        %v447 = vrot.slane %v445, 5
        %v448 = vor.u32 %v444, %v447
        %v449 = vrot.slane %v448, 4
        %v451 = vshll.u32 %v275, 16
        %v453 = vrot.slane %v451, 5
        %v454 = vsel %vm296, %v449, %v453
        %v455 = vshrl.u32 %v275, 16
        %v457 = vrot.slane %v455, 4
        %v458 = vor.u32 %v457, %v453
        %v459 = vrot.slane %v458, 4
        %v461 = vshll.u32 %v276, 16
        %v463 = vrot.slane %v461, 5
        %v464 = vsel %vm296, %v459, %v463
        %v466 = vshrl.u32 %v277, 16
        %v468 = vrot.slane %v466, 4
        %v469 = vshll.u32 %v277, 16
        %v471 = vrot.slane %v469, 5
        %v472 = vor.u32 %v468, %v471
        %v473 = vrot.slane %v472, 4
        %v475 = vshll.u32 %v278, 16
        %v477 = vrot.slane %v475, 5
        %v478 = vsel %vm296, %v473, %v477
        %v479 = vshrl.u32 %v278, 16
        %v481 = vrot.slane %v479, 4
        %v482 = vor.u32 %v481, %v477
        %v483 = vrot.slane %v482, 4
        %v485 = vshll.u32 %v279, 16
        %v487 = vrot.slane %v485, 5
        %v488 = vsel %vm296, %v483, %v487
        %s489 = scalar_lea.vmem %s1, 112
        %v490 = vld [vmem:[%s489] sm:$0xff]
        %v491 = vld [vmem:[%s489 + $0x8] sm:$0xff]
        %v492 = vld [vmem:[%s489 + $0x10] sm:$0xff]
        %v493 = vld [vmem:[%s489 + $0x18] sm:$0xff]
        %v494 = vld [vmem:[%s489 + $0x20] sm:$0xff]
        %v495 = vld [vmem:[%s489 + $0x28] sm:$0xff]
        %v496 = vld [vmem:[%s489 + $0x30] sm:$0xff]
        %v497 = vld [vmem:[%s489 + $0x38] sm:$0xff]
        %v498 = vld [vmem:[%s489 + $0x40] sm:$0xff]
        %v499 = vld [vmem:[%s489 + $0x48] sm:$0xff]
        %v500 = vld [vmem:[%s489 + $0x50] sm:$0xff]
        %v501 = vld [vmem:[%s489 + $0x58] sm:$0xff]
        %v502 = vld [vmem:[%s489 + $0x60] sm:$0x77]
        %v503 = vld [vmem:[%s489 + $0x68] sm:$0x77]
        %v504 = vunpack.c.l.b16 %v310
        %v505 = vunpack.c.l.b16 %v320
        %v506 = vunpack.c.l.b16 %v334
        %v507 = vunpack.c.l.b16 %v344
        %v508 = vunpack.c.l.b16 %v358
        %v509 = vunpack.c.l.b16 %v368
        %v510 = vunpack.c.l.b16 %v382
        %v511 = vunpack.c.l.b16 %v392
        %v512 = vunpack.c.l.b16 %v406
        %v513 = vunpack.c.l.b16 %v416
        %v514 = vunpack.c.l.b16 %v430
        %v515 = vunpack.c.l.b16 %v440
        %v516 = vunpack.c.l.b16 %v454
        %v517 = vunpack.c.l.b16 %v464
        %v518 = vunpack.c.l.b16 %v478
        %v519 = vunpack.c.l.b16 %v488
        %v520 = vpack.c.b16 %v505, %v504
        %v521 = vpack.c.b16 %v507, %v506
        %v522 = vpack.c.b16 %v509, %v508
        %v523 = vpack.c.b16 %v511, %v510
        %v524 = vpack.c.b16 %v513, %v512
        %v525 = vpack.c.b16 %v515, %v514
        %v526 = vpack.c.b16 %v517, %v516
        %v527 = vpack.c.b16 %v519, %v518
        %v542 = vunpack.c.l.b16 %v490
        %v543 = vunpack.c.h.b16 %v490
        %v544 = vunpack.c.l.b16 %v491
        %v545 = vunpack.c.h.b16 %v491
        %v546 = vunpack.c.l.b16 %v492
        %v547 = vunpack.c.h.b16 %v492
        %v548 = vunpack.c.l.b16 %v493
        %v549 = vunpack.c.h.b16 %v493
        %v550 = vunpack.c.l.b16 %v494
        %v551 = vunpack.c.h.b16 %v494
        %v552 = vunpack.c.l.b16 %v495
        %v553 = vunpack.c.h.b16 %v495
        %v554 = vunpack.c.l.b16 %v496
        %v555 = vunpack.c.h.b16 %v496
        %v556 = vunpack.c.l.b16 %v497
        %v557 = vunpack.c.h.b16 %v497
        %v558 = vunpack.c.l.b16 %v498
        %v559 = vunpack.c.h.b16 %v498
        %v560 = vunpack.c.l.b16 %v499
        %v561 = vunpack.c.h.b16 %v499
        %v562 = vunpack.c.l.b16 %v500
        %v563 = vunpack.c.h.b16 %v500
        %v564 = vunpack.c.l.b16 %v501
        %v565 = vunpack.c.h.b16 %v501
        %v566 = vunpack.c.l.b16 %v502
        %v567 = vunpack.c.h.b16 %v502
        %v568 = vunpack.c.l.b16 %v503
        %v569 = vunpack.c.h.b16 %v503
        %v570 = vpack.c.b16 %v546, %v542
        %v571 = vpack.c.b16 %v547, %v543
        %v572 = vpack.c.b16 %v548, %v544
        %v573 = vpack.c.b16 %v549, %v545
        %v574 = vpack.c.b16 %v554, %v550
        %v575 = vpack.c.b16 %v555, %v551
        %v576 = vpack.c.b16 %v556, %v552
        %v577 = vpack.c.b16 %v557, %v553
        %v578 = vpack.c.b16 %v562, %v558
        %v579 = vpack.c.b16 %v563, %v559
        %v580 = vpack.c.b16 %v564, %v560
        %v581 = vpack.c.b16 %v565, %v561
        %v582 = vpack.c.b16 %v566, %v566
        %v583 = vpack.c.b16 %v567, %v567
        %v584 = vpack.c.b16 %v568, %v568
        %v585 = vpack.c.b16 %v569, %v569
        %vm598 = vcmask 441344
        %v600 = vsel %vm598, %v520, 0
        %v603 = vsel %vm598, %v521, 0
        %v606 = vsel %vm598, %v522, 0
        %v609 = vsel %vm598, %v523, 0
        %v612 = vsel %vm598, %v524, 0
        %v615 = vsel %vm598, %v525, 0
        %v618 = vsel %vm598, %v526, 0
        %v621 = vsel %vm598, %v527, 0
        %vm623 = vcmask 1042432
        %v625 = vsel %vm623, %v582, 0
        %v628 = vsel %vm623, %v583, 0
        %v631 = vsel %vm623, %v584, 0
        %v634 = vsel %vm623, %v585, 0
        %636 = vmatprep.subr.bf16.mxu0 %v571
        %637 = vmatpush1.bf16.msra.mxu0 %v570
        %638 = vmatprep.subr.bf16.mxu0 %v575
        %639 = vmatpush1.bf16.msra.mxu0 %v574
        %640 = vmatprep.subr.bf16.mxu0 %v579
        %641 = vmatpush1.bf16.msra.mxu0 %v578
        %642 = vmatprep.subr.bf16.mxu0 %v628
        %643 = vmatpush1.bf16.msra.mxu0 %v625
        %644 = vmatprep.subr.bf16.mxu0 0
        %645 = vmatpush1.bf16.msra.mxu0 0
        %646 = vmatprep.subr.bf16.mxu0 0
        %647 = vmatpush1.bf16.msra.mxu0 0
        %648 = vmatprep.subr.bf16.mxu0 0
        %649 = vmatpush1.bf16.msra.mxu0 0
        %650 = vmatprep.subr.bf16.mxu0 0
        %651 = vmatpush1.bf16.msra.mxu0 0
        %652 = vmatprep.subr.bf16.mxu0 0
        %653 = vmatpush1.bf16.msra.mxu0 0
        %654 = vmatprep.subr.bf16.mxu0 0
        %655 = vmatpush1.bf16.msra.mxu0 0
        %656 = vmatprep.subr.bf16.mxu0 0
        %657 = vmatpush1.bf16.msra.mxu0 0
        %658 = vmatprep.subr.bf16.mxu0 0
        %659 = vmatpush1.bf16.msra.mxu0 0
        %660 = vmatprep.subr.bf16.mxu0 0
        %661 = vmatpush1.bf16.msra.mxu0 0
        %662 = vmatprep.subr.bf16.mxu0 0
        %663 = vmatpush1.bf16.msra.mxu0 0
        %664 = vmatprep.subr.bf16.mxu0 0
        %665 = vmatpush1.bf16.msra.mxu0 0
        %666 = vmatprep.subr.bf16.mxu0 0
        %667 = vmatpush1.bf16.msra.mxu0 0
        %668 = vmatprep.mubr.bf16.mxu0 0
        %669 = vmatmul.mubr.bf16.gmra.mrb[0].mxu0 %v600
        %v670 = vpop.f32.mrb[0].mxu0
        %v671 = vadd.f32 0.0, %v670
        %v672 = vpop.f32.mrb[0].mxu0
        %v673 = vadd.f32 0.0, %v672
        %v674 = vpop.f32.mrb[0].mxu0
        %v675 = vadd.f32 0.0, %v674
        %v676 = vpop.f32.mrb[0].mxu0
        %v677 = vadd.f32 0.0, %v676
        %678 = vmatprep.mubr.bf16.mxu0 0
        %679 = vmatmul.mubr.bf16.gmra.mrb[0].mxu0 %v603
        %v680 = vpop.f32.mrb[0].mxu0
        %v681 = vadd.f32 0.0, %v680
        %v682 = vpop.f32.mrb[0].mxu0
        %v683 = vadd.f32 0.0, %v682
        %v684 = vpop.f32.mrb[0].mxu0
        %v685 = vadd.f32 0.0, %v684
        %v686 = vpop.f32.mrb[0].mxu0
        %v687 = vadd.f32 0.0, %v686
        %688 = vmatprep.mubr.bf16.mxu0 0
        %689 = vmatmul.mubr.bf16.gmra.mrb[0].mxu0 %v606
        %v690 = vpop.f32.mrb[0].mxu0
        %v691 = vadd.f32 0.0, %v690
        %v692 = vpop.f32.mrb[0].mxu0
        %v693 = vadd.f32 0.0, %v692
        %v694 = vpop.f32.mrb[0].mxu0
        %v695 = vadd.f32 0.0, %v694
        %v696 = vpop.f32.mrb[0].mxu0
        %v697 = vadd.f32 0.0, %v696
        %698 = vmatprep.mubr.bf16.mxu0 0
        %699 = vmatmul.mubr.bf16.gmra.mrb[0].mxu0 %v609
        %v700 = vpop.f32.mrb[0].mxu0
        %v701 = vadd.f32 0.0, %v700
        %v702 = vpop.f32.mrb[0].mxu0
        %v703 = vadd.f32 0.0, %v702
        %v704 = vpop.f32.mrb[0].mxu0
        %v705 = vadd.f32 0.0, %v704
        %v706 = vpop.f32.mrb[0].mxu0
        %v707 = vadd.f32 0.0, %v706
        %708 = vmatprep.mubr.bf16.mxu0 0
        %709 = vmatmul.mubr.bf16.gmra.mrb[0].mxu0 %v612
        %v710 = vpop.f32.mrb[0].mxu0
        %v711 = vadd.f32 0.0, %v710
        %v712 = vpop.f32.mrb[0].mxu0
        %v713 = vadd.f32 0.0, %v712
        %v714 = vpop.f32.mrb[0].mxu0
        %v715 = vadd.f32 0.0, %v714
        %v716 = vpop.f32.mrb[0].mxu0
        %v717 = vadd.f32 0.0, %v716
        %718 = vmatprep.mubr.bf16.mxu0 0
        %719 = vmatmul.mubr.bf16.gmra.mrb[0].mxu0 %v615
        %v720 = vpop.f32.mrb[0].mxu0
        %v721 = vadd.f32 0.0, %v720
        %v722 = vpop.f32.mrb[0].mxu0
        %v723 = vadd.f32 0.0, %v722
        %v724 = vpop.f32.mrb[0].mxu0
        %v725 = vadd.f32 0.0, %v724
        %v726 = vpop.f32.mrb[0].mxu0
        %v727 = vadd.f32 0.0, %v726
        %728 = vmatprep.mubr.bf16.mxu0 0
        %729 = vmatmul.mubr.bf16.gmra.mrb[0].mxu0 %v618
        %v730 = vpop.f32.mrb[0].mxu0
        %v731 = vadd.f32 0.0, %v730
        %v732 = vpop.f32.mrb[0].mxu0
        %v733 = vadd.f32 0.0, %v732
        %v734 = vpop.f32.mrb[0].mxu0
        %v735 = vadd.f32 0.0, %v734
        %v736 = vpop.f32.mrb[0].mxu0
        %v737 = vadd.f32 0.0, %v736
        %738 = vmatprep.mubr.bf16.mxu0 0
        %739 = vmatmul.mubr.bf16.gmra.mrb[0].mxu0 %v621
        %v740 = vpop.f32.mrb[0].mxu0
        %v741 = vadd.f32 0.0, %v740
        %v742 = vpop.f32.mrb[0].mxu0
        %v743 = vadd.f32 0.0, %v742
        %v744 = vpop.f32.mrb[0].mxu0
        %v745 = vadd.f32 0.0, %v744
        %v746 = vpop.f32.mrb[0].mxu0
        %v747 = vadd.f32 0.0, %v746
        %748 = vdwg.mxu0
        %749 = vmatprep.subr.bf16.mxu0 %v573
        %750 = vmatpush1.bf16.msra.mxu0 %v572
        %751 = vmatprep.subr.bf16.mxu0 %v577
        %752 = vmatpush1.bf16.msra.mxu0 %v576
        %753 = vmatprep.subr.bf16.mxu0 %v581
        %754 = vmatpush1.bf16.msra.mxu0 %v580
        %755 = vmatprep.subr.bf16.mxu0 %v634
        %756 = vmatpush1.bf16.msra.mxu0 %v631
        %757 = vmatprep.subr.bf16.mxu0 0
        %758 = vmatpush1.bf16.msra.mxu0 0
        %759 = vmatprep.subr.bf16.mxu0 0
        %760 = vmatpush1.bf16.msra.mxu0 0
        %761 = vmatprep.subr.bf16.mxu0 0
        %762 = vmatpush1.bf16.msra.mxu0 0
        %763 = vmatprep.subr.bf16.mxu0 0
        %764 = vmatpush1.bf16.msra.mxu0 0
        %765 = vmatprep.subr.bf16.mxu0 0
        %766 = vmatpush1.bf16.msra.mxu0 0
        %767 = vmatprep.subr.bf16.mxu0 0
        %768 = vmatpush1.bf16.msra.mxu0 0
        %769 = vmatprep.subr.bf16.mxu0 0
        %770 = vmatpush1.bf16.msra.mxu0 0
        %771 = vmatprep.subr.bf16.mxu0 0
        %772 = vmatpush1.bf16.msra.mxu0 0
        %773 = vmatprep.subr.bf16.mxu0 0
        %774 = vmatpush1.bf16.msra.mxu0 0
        %775 = vmatprep.subr.bf16.mxu0 0
        %776 = vmatpush1.bf16.msra.mxu0 0
        %777 = vmatprep.subr.bf16.mxu0 0
        %778 = vmatpush1.bf16.msra.mxu0 0
        %779 = vmatprep.subr.bf16.mxu0 0
        %780 = vmatpush1.bf16.msra.mxu0 0
        %781 = vmatprep.mubr.bf16.mxu0 0
        %782 = vmatmul.mubr.bf16.gmra.mrb[0].mxu0 %v600
        %v783 = vpop.f32.mrb[0].mxu0
        %v784 = vadd.f32 0.0, %v783
        %v785 = vpop.f32.mrb[0].mxu0
        %v786 = vadd.f32 0.0, %v785
        %v787 = vpop.f32.mrb[0].mxu0
        %v788 = vadd.f32 0.0, %v787
        %v789 = vpop.f32.mrb[0].mxu0
        %v790 = vadd.f32 0.0, %v789
        %791 = vmatprep.mubr.bf16.mxu0 0
        %792 = vmatmul.mubr.bf16.gmra.mrb[0].mxu0 %v603
        %v793 = vpop.f32.mrb[0].mxu0
        %v794 = vadd.f32 0.0, %v793
        %v795 = vpop.f32.mrb[0].mxu0
        %v796 = vadd.f32 0.0, %v795
        %v797 = vpop.f32.mrb[0].mxu0
        %v798 = vadd.f32 0.0, %v797
        %v799 = vpop.f32.mrb[0].mxu0
        %v800 = vadd.f32 0.0, %v799
        %801 = vmatprep.mubr.bf16.mxu0 0
        %802 = vmatmul.mubr.bf16.gmra.mrb[0].mxu0 %v606
        %v803 = vpop.f32.mrb[0].mxu0
        %v804 = vadd.f32 0.0, %v803
        %v805 = vpop.f32.mrb[0].mxu0
        %v806 = vadd.f32 0.0, %v805
        %v807 = vpop.f32.mrb[0].mxu0
        %v808 = vadd.f32 0.0, %v807
        %v809 = vpop.f32.mrb[0].mxu0
        %v810 = vadd.f32 0.0, %v809
        %811 = vmatprep.mubr.bf16.mxu0 0
        %812 = vmatmul.mubr.bf16.gmra.mrb[0].mxu0 %v609
        %v813 = vpop.f32.mrb[0].mxu0
        %v814 = vadd.f32 0.0, %v813
        %v815 = vpop.f32.mrb[0].mxu0
        %v816 = vadd.f32 0.0, %v815
        %v817 = vpop.f32.mrb[0].mxu0
        %v818 = vadd.f32 0.0, %v817
        %v819 = vpop.f32.mrb[0].mxu0
        %v820 = vadd.f32 0.0, %v819
        %821 = vmatprep.mubr.bf16.mxu0 0
        %822 = vmatmul.mubr.bf16.gmra.mrb[0].mxu0 %v612
        %v823 = vpop.f32.mrb[0].mxu0
        %v824 = vadd.f32 0.0, %v823
        %v825 = vpop.f32.mrb[0].mxu0
        %v826 = vadd.f32 0.0, %v825
        %v827 = vpop.f32.mrb[0].mxu0
        %v828 = vadd.f32 0.0, %v827
        %v829 = vpop.f32.mrb[0].mxu0
        %v830 = vadd.f32 0.0, %v829
        %831 = vmatprep.mubr.bf16.mxu0 0
        %832 = vmatmul.mubr.bf16.gmra.mrb[0].mxu0 %v615
        %v833 = vpop.f32.mrb[0].mxu0
        %v834 = vadd.f32 0.0, %v833
        %v835 = vpop.f32.mrb[0].mxu0
        %v836 = vadd.f32 0.0, %v835
        %v837 = vpop.f32.mrb[0].mxu0
        %v838 = vadd.f32 0.0, %v837
        %v839 = vpop.f32.mrb[0].mxu0
        %v840 = vadd.f32 0.0, %v839
        %841 = vmatprep.mubr.bf16.mxu0 0
        %842 = vmatmul.mubr.bf16.gmra.mrb[0].mxu0 %v618
        %v843 = vpop.f32.mrb[0].mxu0
        %v844 = vadd.f32 0.0, %v843
        %v845 = vpop.f32.mrb[0].mxu0
        %v846 = vadd.f32 0.0, %v845
        %v847 = vpop.f32.mrb[0].mxu0
        %v848 = vadd.f32 0.0, %v847
        %v849 = vpop.f32.mrb[0].mxu0
        %v850 = vadd.f32 0.0, %v849
        %851 = vmatprep.mubr.bf16.mxu0 0
        %852 = vmatmul.mubr.bf16.gmra.mrb[0].mxu0 %v621
        %v853 = vpop.f32.mrb[0].mxu0
        %v854 = vadd.f32 0.0, %v853
        %v855 = vpop.f32.mrb[0].mxu0
        %v856 = vadd.f32 0.0, %v855
        %v857 = vpop.f32.mrb[0].mxu0
        %v858 = vadd.f32 0.0, %v857
        %v859 = vpop.f32.mrb[0].mxu0
        %v860 = vadd.f32 0.0, %v859
        %861 = vdwg.mxu0
        %v878 = vunpack.c.l.b16 %v256
        %v879 = vunpack.c.l.b16 %v257
        %v880 = vunpack.c.l.b16 %v259
        %v881 = vunpack.c.l.b16 %v260
        %v882 = vunpack.c.l.b16 %v262
        %v883 = vunpack.c.l.b16 %v263
        %v884 = vunpack.c.l.b16 %v265
        %v885 = vunpack.c.l.b16 %v266
        %v886 = vunpack.c.l.b16 %v268
        %v887 = vunpack.c.l.b16 %v269
        %v888 = vunpack.c.l.b16 %v271
        %v889 = vunpack.c.l.b16 %v272
        %v890 = vunpack.c.l.b16 %v274
        %v891 = vunpack.c.l.b16 %v275
        %v892 = vunpack.c.l.b16 %v277
        %v893 = vunpack.c.l.b16 %v278
        %v894 = vpack.c.b16 %v879, %v878
        %v895 = vpack.c.b16 %v881, %v880
        %v896 = vpack.c.b16 %v883, %v882
        %v897 = vpack.c.b16 %v885, %v884
        %v898 = vpack.c.b16 %v887, %v886
        %v899 = vpack.c.b16 %v889, %v888
        %v900 = vpack.c.b16 %v891, %v890
        %v901 = vpack.c.b16 %v893, %v892
        %v916 = vunpack.c.l.b16 %v280
        %v917 = vunpack.c.h.b16 %v280
        %v918 = vunpack.c.l.b16 %v281
        %v919 = vunpack.c.h.b16 %v281
        %v920 = vunpack.c.l.b16 %v282
        %v921 = vunpack.c.h.b16 %v282
        %v922 = vunpack.c.l.b16 %v283
        %v923 = vunpack.c.h.b16 %v283
        %v924 = vunpack.c.l.b16 %v284
        %v925 = vunpack.c.h.b16 %v284
        %v926 = vunpack.c.l.b16 %v285
        %v927 = vunpack.c.h.b16 %v285
        %v928 = vunpack.c.l.b16 %v286
        %v929 = vunpack.c.h.b16 %v286
        %v930 = vunpack.c.l.b16 %v287
        %v931 = vunpack.c.h.b16 %v287
        %v932 = vunpack.c.l.b16 %v288
        %v933 = vunpack.c.h.b16 %v288
        %v934 = vunpack.c.l.b16 %v289
        %v935 = vunpack.c.h.b16 %v289
        %v936 = vunpack.c.l.b16 %v290
        %v937 = vunpack.c.h.b16 %v290
        %v938 = vunpack.c.l.b16 %v291
        %v939 = vunpack.c.h.b16 %v291
        %v940 = vunpack.c.l.b16 %v292
        %v941 = vunpack.c.h.b16 %v292
        %v942 = vunpack.c.l.b16 %v293
        %v943 = vunpack.c.h.b16 %v293
        %v944 = vpack.c.b16 %v920, %v916
        %v945 = vpack.c.b16 %v921, %v917
        %v946 = vpack.c.b16 %v922, %v918
        %v947 = vpack.c.b16 %v923, %v919
        %v948 = vpack.c.b16 %v928, %v924
        %v949 = vpack.c.b16 %v929, %v925
        %v950 = vpack.c.b16 %v930, %v926
        %v951 = vpack.c.b16 %v931, %v927
        %v952 = vpack.c.b16 %v936, %v932
        %v953 = vpack.c.b16 %v937, %v933
        %v954 = vpack.c.b16 %v938, %v934
        %v955 = vpack.c.b16 %v939, %v935
        %v956 = vpack.c.b16 %v940, %v940
        %v957 = vpack.c.b16 %v941, %v941
        %v958 = vpack.c.b16 %v942, %v942
        %v959 = vpack.c.b16 %v943, %v943
        %v973 = vsel %vm598, %v894, 0
        %v976 = vsel %vm598, %v895, 0
        %v979 = vsel %vm598, %v896, 0
        %v982 = vsel %vm598, %v897, 0
        %v985 = vsel %vm598, %v898, 0
        %v988 = vsel %vm598, %v899, 0
        %v991 = vsel %vm598, %v900, 0
        %v994 = vsel %vm598, %v901, 0
        %v997 = vsel %vm623, %v956, 0
        %v1000 = vsel %vm623, %v957, 0
        %v1003 = vsel %vm623, %v958, 0
        %v1006 = vsel %vm623, %v959, 0
        %1008 = vmatprep.subr.bf16.mxu0 %v945
        %1009 = vmatpush1.bf16.msra.mxu0 %v944
        %1010 = vmatprep.subr.bf16.mxu0 %v949
        %1011 = vmatpush1.bf16.msra.mxu0 %v948
        %1012 = vmatprep.subr.bf16.mxu0 %v953
        %1013 = vmatpush1.bf16.msra.mxu0 %v952
        %1014 = vmatprep.subr.bf16.mxu0 %v1000
        %1015 = vmatpush1.bf16.msra.mxu0 %v997
        %1016 = vmatprep.subr.bf16.mxu0 0
        %1017 = vmatpush1.bf16.msra.mxu0 0
        %1018 = vmatprep.subr.bf16.mxu0 0
        %1019 = vmatpush1.bf16.msra.mxu0 0
        %1020 = vmatprep.subr.bf16.mxu0 0
        %1021 = vmatpush1.bf16.msra.mxu0 0
        %1022 = vmatprep.subr.bf16.mxu0 0
        %1023 = vmatpush1.bf16.msra.mxu0 0
        %1024 = vmatprep.subr.bf16.mxu0 0
        %1025 = vmatpush1.bf16.msra.mxu0 0
        %1026 = vmatprep.subr.bf16.mxu0 0
        %1027 = vmatpush1.bf16.msra.mxu0 0
        %1028 = vmatprep.subr.bf16.mxu0 0
        %1029 = vmatpush1.bf16.msra.mxu0 0
        %1030 = vmatprep.subr.bf16.mxu0 0
        %1031 = vmatpush1.bf16.msra.mxu0 0
        %1032 = vmatprep.subr.bf16.mxu0 0
        %1033 = vmatpush1.bf16.msra.mxu0 0
        %1034 = vmatprep.subr.bf16.mxu0 0
        %1035 = vmatpush1.bf16.msra.mxu0 0
        %1036 = vmatprep.subr.bf16.mxu0 0
        %1037 = vmatpush1.bf16.msra.mxu0 0
        %1038 = vmatprep.subr.bf16.mxu0 0
        %1039 = vmatpush1.bf16.msra.mxu0 0
        %1040 = vmatprep.mubr.bf16.mxu0 0
        %1041 = vmatmul.mubr.bf16.gmra.mrb[0].mxu0 %v973
        %v1042 = vpop.f32.mrb[0].mxu0
        %v1043 = vadd.f32 %v671, %v1042
        %v1044 = vpop.f32.mrb[0].mxu0
        %v1045 = vadd.f32 %v673, %v1044
        %v1046 = vpop.f32.mrb[0].mxu0
        %v1047 = vadd.f32 %v675, %v1046
        %v1048 = vpop.f32.mrb[0].mxu0
        %v1049 = vadd.f32 %v677, %v1048
        %1050 = vmatprep.mubr.bf16.mxu0 0
        %1051 = vmatmul.mubr.bf16.gmra.mrb[0].mxu0 %v976
        %v1052 = vpop.f32.mrb[0].mxu0
        %v1053 = vadd.f32 %v681, %v1052
        %v1054 = vpop.f32.mrb[0].mxu0
        %v1055 = vadd.f32 %v683, %v1054
        %v1056 = vpop.f32.mrb[0].mxu0
        %v1057 = vadd.f32 %v685, %v1056
        %v1058 = vpop.f32.mrb[0].mxu0
        %v1059 = vadd.f32 %v687, %v1058
        %1060 = vmatprep.mubr.bf16.mxu0 0
        %1061 = vmatmul.mubr.bf16.gmra.mrb[0].mxu0 %v979
        %v1062 = vpop.f32.mrb[0].mxu0
        %v1063 = vadd.f32 %v691, %v1062
        %v1064 = vpop.f32.mrb[0].mxu0
        %v1065 = vadd.f32 %v693, %v1064
        %v1066 = vpop.f32.mrb[0].mxu0
        %v1067 = vadd.f32 %v695, %v1066
        %v1068 = vpop.f32.mrb[0].mxu0
        %v1069 = vadd.f32 %v697, %v1068
        %1070 = vmatprep.mubr.bf16.mxu0 0
        %1071 = vmatmul.mubr.bf16.gmra.mrb[0].mxu0 %v982
        %v1072 = vpop.f32.mrb[0].mxu0
        %v1073 = vadd.f32 %v701, %v1072
        %v1074 = vpop.f32.mrb[0].mxu0
        %v1075 = vadd.f32 %v703, %v1074
        %v1076 = vpop.f32.mrb[0].mxu0
        %v1077 = vadd.f32 %v705, %v1076
        %v1078 = vpop.f32.mrb[0].mxu0
        %v1079 = vadd.f32 %v707, %v1078
        %1080 = vmatprep.mubr.bf16.mxu0 0
        %1081 = vmatmul.mubr.bf16.gmra.mrb[0].mxu0 %v985
        %v1082 = vpop.f32.mrb[0].mxu0
        %v1083 = vadd.f32 %v711, %v1082
        %v1084 = vpop.f32.mrb[0].mxu0
        %v1085 = vadd.f32 %v713, %v1084
        %v1086 = vpop.f32.mrb[0].mxu0
        %v1087 = vadd.f32 %v715, %v1086
        %v1088 = vpop.f32.mrb[0].mxu0
        %v1089 = vadd.f32 %v717, %v1088
        %1090 = vmatprep.mubr.bf16.mxu0 0
        %1091 = vmatmul.mubr.bf16.gmra.mrb[0].mxu0 %v988
        %v1092 = vpop.f32.mrb[0].mxu0
        %v1093 = vadd.f32 %v721, %v1092
        %v1094 = vpop.f32.mrb[0].mxu0
        %v1095 = vadd.f32 %v723, %v1094
        %v1096 = vpop.f32.mrb[0].mxu0
        %v1097 = vadd.f32 %v725, %v1096
        %v1098 = vpop.f32.mrb[0].mxu0
        %v1099 = vadd.f32 %v727, %v1098
        %1100 = vmatprep.mubr.bf16.mxu0 0
        %1101 = vmatmul.mubr.bf16.gmra.mrb[0].mxu0 %v991
        %v1102 = vpop.f32.mrb[0].mxu0
        %v1103 = vadd.f32 %v731, %v1102
        %v1104 = vpop.f32.mrb[0].mxu0
        %v1105 = vadd.f32 %v733, %v1104
        %v1106 = vpop.f32.mrb[0].mxu0
        %v1107 = vadd.f32 %v735, %v1106
        %v1108 = vpop.f32.mrb[0].mxu0
        %v1109 = vadd.f32 %v737, %v1108
        %1110 = vmatprep.mubr.bf16.mxu0 0
        %1111 = vmatmul.mubr.bf16.gmra.mrb[0].mxu0 %v994
        %v1112 = vpop.f32.mrb[0].mxu0
        %v1113 = vadd.f32 %v741, %v1112
        %v1114 = vpop.f32.mrb[0].mxu0
        %v1115 = vadd.f32 %v743, %v1114
        %v1116 = vpop.f32.mrb[0].mxu0
        %v1117 = vadd.f32 %v745, %v1116
        %v1118 = vpop.f32.mrb[0].mxu0
        %v1119 = vadd.f32 %v747, %v1118
        %1120 = vdwg.mxu0
        %1121 = vmatprep.subr.bf16.mxu0 %v947
        %1122 = vmatpush1.bf16.msra.mxu0 %v946
        %1123 = vmatprep.subr.bf16.mxu0 %v951
        %1124 = vmatpush1.bf16.msra.mxu0 %v950
        %1125 = vmatprep.subr.bf16.mxu0 %v955
        %1126 = vmatpush1.bf16.msra.mxu0 %v954
        %1127 = vmatprep.subr.bf16.mxu0 %v1006
        %1128 = vmatpush1.bf16.msra.mxu0 %v1003
        %1129 = vmatprep.subr.bf16.mxu0 0
        %1130 = vmatpush1.bf16.msra.mxu0 0
        %1131 = vmatprep.subr.bf16.mxu0 0
        %1132 = vmatpush1.bf16.msra.mxu0 0
        %1133 = vmatprep.subr.bf16.mxu0 0
        %1134 = vmatpush1.bf16.msra.mxu0 0
        %1135 = vmatprep.subr.bf16.mxu0 0
        %1136 = vmatpush1.bf16.msra.mxu0 0
        %1137 = vmatprep.subr.bf16.mxu0 0
        %1138 = vmatpush1.bf16.msra.mxu0 0
        %1139 = vmatprep.subr.bf16.mxu0 0
        %1140 = vmatpush1.bf16.msra.mxu0 0
        %1141 = vmatprep.subr.bf16.mxu0 0
        %1142 = vmatpush1.bf16.msra.mxu0 0
        %1143 = vmatprep.subr.bf16.mxu0 0
        %1144 = vmatpush1.bf16.msra.mxu0 0
        %1145 = vmatprep.subr.bf16.mxu0 0
        %1146 = vmatpush1.bf16.msra.mxu0 0
        %1147 = vmatprep.subr.bf16.mxu0 0
        %1148 = vmatpush1.bf16.msra.mxu0 0
        %1149 = vmatprep.subr.bf16.mxu0 0
        %1150 = vmatpush1.bf16.msra.mxu0 0
        %1151 = vmatprep.subr.bf16.mxu0 0
        %1152 = vmatpush1.bf16.msra.mxu0 0
        %1153 = vmatprep.mubr.bf16.mxu0 0
        %1154 = vmatmul.mubr.bf16.gmra.mrb[0].mxu0 %v973
        %v1155 = vpop.f32.mrb[0].mxu0
        %v1156 = vadd.f32 %v784, %v1155
        %v1157 = vpop.f32.mrb[0].mxu0
        %v1158 = vadd.f32 %v786, %v1157
        %v1159 = vpop.f32.mrb[0].mxu0
        %v1160 = vadd.f32 %v788, %v1159
        %v1161 = vpop.f32.mrb[0].mxu0
        %v1162 = vadd.f32 %v790, %v1161
        %1163 = vmatprep.mubr.bf16.mxu0 0
        %1164 = vmatmul.mubr.bf16.gmra.mrb[0].mxu0 %v976
        %v1165 = vpop.f32.mrb[0].mxu0
        %v1166 = vadd.f32 %v794, %v1165
        %v1167 = vpop.f32.mrb[0].mxu0
        %v1168 = vadd.f32 %v796, %v1167
        %v1169 = vpop.f32.mrb[0].mxu0
        %v1170 = vadd.f32 %v798, %v1169
        %v1171 = vpop.f32.mrb[0].mxu0
        %v1172 = vadd.f32 %v800, %v1171
        %1173 = vmatprep.mubr.bf16.mxu0 0
        %1174 = vmatmul.mubr.bf16.gmra.mrb[0].mxu0 %v979
        %v1175 = vpop.f32.mrb[0].mxu0
        %v1176 = vadd.f32 %v804, %v1175
        %v1177 = vpop.f32.mrb[0].mxu0
        %v1178 = vadd.f32 %v806, %v1177
        %v1179 = vpop.f32.mrb[0].mxu0
        %v1180 = vadd.f32 %v808, %v1179
        %v1181 = vpop.f32.mrb[0].mxu0
        %v1182 = vadd.f32 %v810, %v1181
        %1183 = vmatprep.mubr.bf16.mxu0 0
        %1184 = vmatmul.mubr.bf16.gmra.mrb[0].mxu0 %v982
        %v1185 = vpop.f32.mrb[0].mxu0
        %v1186 = vadd.f32 %v814, %v1185
        %v1187 = vpop.f32.mrb[0].mxu0
        %v1188 = vadd.f32 %v816, %v1187
        %v1189 = vpop.f32.mrb[0].mxu0
        %v1190 = vadd.f32 %v818, %v1189
        %v1191 = vpop.f32.mrb[0].mxu0
        %v1192 = vadd.f32 %v820, %v1191
        %1193 = vmatprep.mubr.bf16.mxu0 0
        %1194 = vmatmul.mubr.bf16.gmra.mrb[0].mxu0 %v985
        %v1195 = vpop.f32.mrb[0].mxu0
        %v1196 = vadd.f32 %v824, %v1195
        %v1197 = vpop.f32.mrb[0].mxu0
        %v1198 = vadd.f32 %v826, %v1197
        %v1199 = vpop.f32.mrb[0].mxu0
        %v1200 = vadd.f32 %v828, %v1199
        %v1201 = vpop.f32.mrb[0].mxu0
        %v1202 = vadd.f32 %v830, %v1201
        %1203 = vmatprep.mubr.bf16.mxu0 0
        %1204 = vmatmul.mubr.bf16.gmra.mrb[0].mxu0 %v988
        %v1205 = vpop.f32.mrb[0].mxu0
        %v1206 = vadd.f32 %v834, %v1205
        %v1207 = vpop.f32.mrb[0].mxu0
        %v1208 = vadd.f32 %v836, %v1207
        %v1209 = vpop.f32.mrb[0].mxu0
        %v1210 = vadd.f32 %v838, %v1209
        %v1211 = vpop.f32.mrb[0].mxu0
        %v1212 = vadd.f32 %v840, %v1211
        %1213 = vmatprep.mubr.bf16.mxu0 0
        %1214 = vmatmul.mubr.bf16.gmra.mrb[0].mxu0 %v991
        %v1215 = vpop.f32.mrb[0].mxu0
        %v1216 = vadd.f32 %v844, %v1215
        %v1217 = vpop.f32.mrb[0].mxu0
        %v1218 = vadd.f32 %v846, %v1217
        %v1219 = vpop.f32.mrb[0].mxu0
        %v1220 = vadd.f32 %v848, %v1219
        %v1221 = vpop.f32.mrb[0].mxu0
        %v1222 = vadd.f32 %v850, %v1221
        %1223 = vmatprep.mubr.bf16.mxu0 0
        %1224 = vmatmul.mubr.bf16.gmra.mrb[0].mxu0 %v994
        %v1225 = vpop.f32.mrb[0].mxu0
        %v1226 = vadd.f32 %v854, %v1225
        %v1227 = vpop.f32.mrb[0].mxu0
        %v1228 = vadd.f32 %v856, %v1227
        %v1229 = vpop.f32.mrb[0].mxu0
        %v1230 = vadd.f32 %v858, %v1229
        %v1231 = vpop.f32.mrb[0].mxu0
        %v1232 = vadd.f32 %v860, %v1231
        %1233 = vdwg.mxu0
        %vm1242 = vcmask 1042432
        %vm1243 = vcmask 1046532
        %vm1244 = vmor %vm1242, %vm1243
        %v1245 = vrot.slane %v256, 5
        %v1246 = vrot.slane %v1245, 4
        %v1247 = vrot.slane %v257, 5
        %v1248 = vsel %vm1244, %v1246, %v1247
        %v1249 = vrot.slane %v1247, 4
        %v1250 = vrot.slane %v258, 5
        %v1251 = vsel %vm1244, %v1249, %v1250
        %v1252 = vrot.slane %v259, 5
        %v1253 = vrot.slane %v1252, 4
        %v1254 = vrot.slane %v260, 5
        %v1255 = vsel %vm1244, %v1253, %v1254
        %v1256 = vrot.slane %v1254, 4
        %v1257 = vrot.slane %v261, 5
        %v1258 = vsel %vm1244, %v1256, %v1257
        %v1259 = vrot.slane %v262, 5
        %v1260 = vrot.slane %v1259, 4
        %v1261 = vrot.slane %v263, 5
        %v1262 = vsel %vm1244, %v1260, %v1261
        %v1263 = vrot.slane %v1261, 4
        %v1264 = vrot.slane %v264, 5
        %v1265 = vsel %vm1244, %v1263, %v1264
        %v1266 = vrot.slane %v265, 5
        %v1267 = vrot.slane %v1266, 4
        %v1268 = vrot.slane %v266, 5
        %v1269 = vsel %vm1244, %v1267, %v1268
        %v1270 = vrot.slane %v1268, 4
        %v1271 = vrot.slane %v267, 5
        %v1272 = vsel %vm1244, %v1270, %v1271
        %v1273 = vrot.slane %v268, 5
        %v1274 = vrot.slane %v1273, 4
        %v1275 = vrot.slane %v269, 5
        %v1276 = vsel %vm1244, %v1274, %v1275
        %v1277 = vrot.slane %v1275, 4
        %v1278 = vrot.slane %v270, 5
        %v1279 = vsel %vm1244, %v1277, %v1278
        %v1280 = vrot.slane %v271, 5
        %v1281 = vrot.slane %v1280, 4
        %v1282 = vrot.slane %v272, 5
        %v1283 = vsel %vm1244, %v1281, %v1282
        %v1284 = vrot.slane %v1282, 4
        %v1285 = vrot.slane %v273, 5
        %v1286 = vsel %vm1244, %v1284, %v1285
        %v1287 = vrot.slane %v274, 5
        %v1288 = vrot.slane %v1287, 4
        %v1289 = vrot.slane %v275, 5
        %v1290 = vsel %vm1244, %v1288, %v1289
        %v1291 = vrot.slane %v1289, 4
        %v1292 = vrot.slane %v276, 5
        %v1293 = vsel %vm1244, %v1291, %v1292
        %v1294 = vrot.slane %v277, 5
        %v1295 = vrot.slane %v1294, 4
        %v1296 = vrot.slane %v278, 5
        %v1297 = vsel %vm1244, %v1295, %v1296
        %v1298 = vrot.slane %v1296, 4
        %v1299 = vrot.slane %v279, 5
        %v1300 = vsel %vm1244, %v1298, %v1299
        %s1301 = scalar_lea.vmem %s1, 224
        %v1302 = vld [vmem:[%s1301] sm:$0xff]
        %v1303 = vld [vmem:[%s1301 + $0x8] sm:$0xff]
        %v1304 = vld [vmem:[%s1301 + $0x10] sm:$0xff]
        %v1305 = vld [vmem:[%s1301 + $0x18] sm:$0xff]
        %v1306 = vld [vmem:[%s1301 + $0x20] sm:$0xff]
        %v1307 = vld [vmem:[%s1301 + $0x28] sm:$0xff]
        %v1308 = vld [vmem:[%s1301 + $0x30] sm:$0xff]
        %v1309 = vld [vmem:[%s1301 + $0x38] sm:$0xff]
        %v1310 = vld [vmem:[%s1301 + $0x40] sm:$0xff]
        %v1311 = vld [vmem:[%s1301 + $0x48] sm:$0xff]
        %v1312 = vld [vmem:[%s1301 + $0x50] sm:$0xff]
        %v1313 = vld [vmem:[%s1301 + $0x58] sm:$0xff]
        %v1314 = vld [vmem:[%s1301 + $0x60] sm:$0x77]
        %v1315 = vld [vmem:[%s1301 + $0x68] sm:$0x77]
        %v1316 = vunpack.c.l.b16 %v1248
        %v1317 = vunpack.c.l.b16 %v1251
        %v1318 = vunpack.c.l.b16 %v1255
        %v1319 = vunpack.c.l.b16 %v1258
        %v1320 = vunpack.c.l.b16 %v1262
        %v1321 = vunpack.c.l.b16 %v1265
        %v1322 = vunpack.c.l.b16 %v1269
        %v1323 = vunpack.c.l.b16 %v1272
        %v1324 = vunpack.c.l.b16 %v1276
        %v1325 = vunpack.c.l.b16 %v1279
        %v1326 = vunpack.c.l.b16 %v1283
        %v1327 = vunpack.c.l.b16 %v1286
        %v1328 = vunpack.c.l.b16 %v1290
        %v1329 = vunpack.c.l.b16 %v1293
        %v1330 = vunpack.c.l.b16 %v1297
        %v1331 = vunpack.c.l.b16 %v1300
        %v1332 = vpack.c.b16 %v1317, %v1316
        %v1333 = vpack.c.b16 %v1319, %v1318
        %v1334 = vpack.c.b16 %v1321, %v1320
        %v1335 = vpack.c.b16 %v1323, %v1322
        %v1336 = vpack.c.b16 %v1325, %v1324
        %v1337 = vpack.c.b16 %v1327, %v1326
        %v1338 = vpack.c.b16 %v1329, %v1328
        %v1339 = vpack.c.b16 %v1331, %v1330
        %v1354 = vunpack.c.l.b16 %v1302
        %v1355 = vunpack.c.h.b16 %v1302
        %v1356 = vunpack.c.l.b16 %v1303
        %v1357 = vunpack.c.h.b16 %v1303
        %v1358 = vunpack.c.l.b16 %v1304
        %v1359 = vunpack.c.h.b16 %v1304
        %v1360 = vunpack.c.l.b16 %v1305
        %v1361 = vunpack.c.h.b16 %v1305
        %v1362 = vunpack.c.l.b16 %v1306
        %v1363 = vunpack.c.h.b16 %v1306
        %v1364 = vunpack.c.l.b16 %v1307
        %v1365 = vunpack.c.h.b16 %v1307
        %v1366 = vunpack.c.l.b16 %v1308
        %v1367 = vunpack.c.h.b16 %v1308
        %v1368 = vunpack.c.l.b16 %v1309
        %v1369 = vunpack.c.h.b16 %v1309
        %v1370 = vunpack.c.l.b16 %v1310
        %v1371 = vunpack.c.h.b16 %v1310
        %v1372 = vunpack.c.l.b16 %v1311
        %v1373 = vunpack.c.h.b16 %v1311
        %v1374 = vunpack.c.l.b16 %v1312
        %v1375 = vunpack.c.h.b16 %v1312
        %v1376 = vunpack.c.l.b16 %v1313
        %v1377 = vunpack.c.h.b16 %v1313
        %v1378 = vunpack.c.l.b16 %v1314
        %v1379 = vunpack.c.h.b16 %v1314
        %v1380 = vunpack.c.l.b16 %v1315
        %v1381 = vunpack.c.h.b16 %v1315
        %v1382 = vpack.c.b16 %v1358, %v1354
        %v1383 = vpack.c.b16 %v1359, %v1355
        %v1384 = vpack.c.b16 %v1360, %v1356
        %v1385 = vpack.c.b16 %v1361, %v1357
        %v1386 = vpack.c.b16 %v1366, %v1362
        %v1387 = vpack.c.b16 %v1367, %v1363
        %v1388 = vpack.c.b16 %v1368, %v1364
        %v1389 = vpack.c.b16 %v1369, %v1365
        %v1390 = vpack.c.b16 %v1374, %v1370
        %v1391 = vpack.c.b16 %v1375, %v1371
        %v1392 = vpack.c.b16 %v1376, %v1372
        %v1393 = vpack.c.b16 %v1377, %v1373
        %v1394 = vpack.c.b16 %v1378, %v1378
        %v1395 = vpack.c.b16 %v1379, %v1379
        %v1396 = vpack.c.b16 %v1380, %v1380
        %v1397 = vpack.c.b16 %v1381, %v1381
        %v1411 = vsel %vm598, %v1332, 0
        %v1414 = vsel %vm598, %v1333, 0
        %v1417 = vsel %vm598, %v1334, 0
        %v1420 = vsel %vm598, %v1335, 0
        %v1423 = vsel %vm598, %v1336, 0
        %v1426 = vsel %vm598, %v1337, 0
        %v1429 = vsel %vm598, %v1338, 0
        %v1432 = vsel %vm598, %v1339, 0
        %v1435 = vsel %vm623, %v1394, 0
        %v1438 = vsel %vm623, %v1395, 0
        %v1441 = vsel %vm623, %v1396, 0
        %v1444 = vsel %vm623, %v1397, 0
        %1446 = vmatprep.subr.bf16.mxu0 %v1383
        %1447 = vmatpush1.bf16.msra.mxu0 %v1382
        %1448 = vmatprep.subr.bf16.mxu0 %v1387
        %1449 = vmatpush1.bf16.msra.mxu0 %v1386
        %1450 = vmatprep.subr.bf16.mxu0 %v1391
        %1451 = vmatpush1.bf16.msra.mxu0 %v1390
        %1452 = vmatprep.subr.bf16.mxu0 %v1438
        %1453 = vmatpush1.bf16.msra.mxu0 %v1435
        %1454 = vmatprep.subr.bf16.mxu0 0
        %1455 = vmatpush1.bf16.msra.mxu0 0
        %1456 = vmatprep.subr.bf16.mxu0 0
        %1457 = vmatpush1.bf16.msra.mxu0 0
        %1458 = vmatprep.subr.bf16.mxu0 0
        %1459 = vmatpush1.bf16.msra.mxu0 0
        %1460 = vmatprep.subr.bf16.mxu0 0
        %1461 = vmatpush1.bf16.msra.mxu0 0
        %1462 = vmatprep.subr.bf16.mxu0 0
        %1463 = vmatpush1.bf16.msra.mxu0 0
        %1464 = vmatprep.subr.bf16.mxu0 0
        %1465 = vmatpush1.bf16.msra.mxu0 0
        %1466 = vmatprep.subr.bf16.mxu0 0
        %1467 = vmatpush1.bf16.msra.mxu0 0
        %1468 = vmatprep.subr.bf16.mxu0 0
        %1469 = vmatpush1.bf16.msra.mxu0 0
        %1470 = vmatprep.subr.bf16.mxu0 0
        %1471 = vmatpush1.bf16.msra.mxu0 0
        %1472 = vmatprep.subr.bf16.mxu0 0
        %1473 = vmatpush1.bf16.msra.mxu0 0
        %1474 = vmatprep.subr.bf16.mxu0 0
        %1475 = vmatpush1.bf16.msra.mxu0 0
        %1476 = vmatprep.subr.bf16.mxu0 0
        %1477 = vmatpush1.bf16.msra.mxu0 0
        %1478 = vmatprep.mubr.bf16.mxu0 0
        %1479 = vmatmul.mubr.bf16.gmra.mrb[0].mxu0 %v1411
        %v1480 = vpop.f32.mrb[0].mxu0
        %v1481 = vadd.f32 0.0, %v1480
        %v1482 = vpop.f32.mrb[0].mxu0
        %v1483 = vadd.f32 0.0, %v1482
        %v1484 = vpop.f32.mrb[0].mxu0
        %v1485 = vadd.f32 0.0, %v1484
        %v1486 = vpop.f32.mrb[0].mxu0
        %v1487 = vadd.f32 0.0, %v1486
        %1488 = vmatprep.mubr.bf16.mxu0 0
        %1489 = vmatmul.mubr.bf16.gmra.mrb[0].mxu0 %v1414
        %v1490 = vpop.f32.mrb[0].mxu0
        %v1491 = vadd.f32 0.0, %v1490
        %v1492 = vpop.f32.mrb[0].mxu0
        %v1493 = vadd.f32 0.0, %v1492
        %v1494 = vpop.f32.mrb[0].mxu0
        %v1495 = vadd.f32 0.0, %v1494
        %v1496 = vpop.f32.mrb[0].mxu0
        %v1497 = vadd.f32 0.0, %v1496
        %1498 = vmatprep.mubr.bf16.mxu0 0
        %1499 = vmatmul.mubr.bf16.gmra.mrb[0].mxu0 %v1417
        %v1500 = vpop.f32.mrb[0].mxu0
        %v1501 = vadd.f32 0.0, %v1500
        %v1502 = vpop.f32.mrb[0].mxu0
        %v1503 = vadd.f32 0.0, %v1502
        %v1504 = vpop.f32.mrb[0].mxu0
        %v1505 = vadd.f32 0.0, %v1504
        %v1506 = vpop.f32.mrb[0].mxu0
        %v1507 = vadd.f32 0.0, %v1506
        %1508 = vmatprep.mubr.bf16.mxu0 0
        %1509 = vmatmul.mubr.bf16.gmra.mrb[0].mxu0 %v1420
        %v1510 = vpop.f32.mrb[0].mxu0
        %v1511 = vadd.f32 0.0, %v1510
        %v1512 = vpop.f32.mrb[0].mxu0
        %v1513 = vadd.f32 0.0, %v1512
        %v1514 = vpop.f32.mrb[0].mxu0
        %v1515 = vadd.f32 0.0, %v1514
        %v1516 = vpop.f32.mrb[0].mxu0
        %v1517 = vadd.f32 0.0, %v1516
        %1518 = vmatprep.mubr.bf16.mxu0 0
        %1519 = vmatmul.mubr.bf16.gmra.mrb[0].mxu0 %v1423
        %v1520 = vpop.f32.mrb[0].mxu0
        %v1521 = vadd.f32 0.0, %v1520
        %v1522 = vpop.f32.mrb[0].mxu0
        %v1523 = vadd.f32 0.0, %v1522
        %v1524 = vpop.f32.mrb[0].mxu0
        %v1525 = vadd.f32 0.0, %v1524
        %v1526 = vpop.f32.mrb[0].mxu0
        %v1527 = vadd.f32 0.0, %v1526
        %1528 = vmatprep.mubr.bf16.mxu0 0
        %1529 = vmatmul.mubr.bf16.gmra.mrb[0].mxu0 %v1426
        %v1530 = vpop.f32.mrb[0].mxu0
        %v1531 = vadd.f32 0.0, %v1530
        %v1532 = vpop.f32.mrb[0].mxu0
        %v1533 = vadd.f32 0.0, %v1532
        %v1534 = vpop.f32.mrb[0].mxu0
        %v1535 = vadd.f32 0.0, %v1534
        %v1536 = vpop.f32.mrb[0].mxu0
        %v1537 = vadd.f32 0.0, %v1536
        %1538 = vmatprep.mubr.bf16.mxu0 0
        %1539 = vmatmul.mubr.bf16.gmra.mrb[0].mxu0 %v1429
        %v1540 = vpop.f32.mrb[0].mxu0
        %v1541 = vadd.f32 0.0, %v1540
        %v1542 = vpop.f32.mrb[0].mxu0
        %v1543 = vadd.f32 0.0, %v1542
        %v1544 = vpop.f32.mrb[0].mxu0
        %v1545 = vadd.f32 0.0, %v1544
        %v1546 = vpop.f32.mrb[0].mxu0
        %v1547 = vadd.f32 0.0, %v1546
        %1548 = vmatprep.mubr.bf16.mxu0 0
        %1549 = vmatmul.mubr.bf16.gmra.mrb[0].mxu0 %v1432
        %v1550 = vpop.f32.mrb[0].mxu0
        %v1551 = vadd.f32 0.0, %v1550
        %v1552 = vpop.f32.mrb[0].mxu0
        %v1553 = vadd.f32 0.0, %v1552
        %v1554 = vpop.f32.mrb[0].mxu0
        %v1555 = vadd.f32 0.0, %v1554
        %v1556 = vpop.f32.mrb[0].mxu0
        %v1557 = vadd.f32 0.0, %v1556
        %1558 = vdwg.mxu0
        %1559 = vmatprep.subr.bf16.mxu0 %v1385
        %1560 = vmatpush1.bf16.msra.mxu0 %v1384
        %1561 = vmatprep.subr.bf16.mxu0 %v1389
        %1562 = vmatpush1.bf16.msra.mxu0 %v1388
        %1563 = vmatprep.subr.bf16.mxu0 %v1393
        %1564 = vmatpush1.bf16.msra.mxu0 %v1392
        %1565 = vmatprep.subr.bf16.mxu0 %v1444
        %1566 = vmatpush1.bf16.msra.mxu0 %v1441
        %1567 = vmatprep.subr.bf16.mxu0 0
        %1568 = vmatpush1.bf16.msra.mxu0 0
        %1569 = vmatprep.subr.bf16.mxu0 0
        %1570 = vmatpush1.bf16.msra.mxu0 0
        %1571 = vmatprep.subr.bf16.mxu0 0
        %1572 = vmatpush1.bf16.msra.mxu0 0
        %1573 = vmatprep.subr.bf16.mxu0 0
        %1574 = vmatpush1.bf16.msra.mxu0 0
        %1575 = vmatprep.subr.bf16.mxu0 0
        %1576 = vmatpush1.bf16.msra.mxu0 0
        %1577 = vmatprep.subr.bf16.mxu0 0
        %1578 = vmatpush1.bf16.msra.mxu0 0
        %1579 = vmatprep.subr.bf16.mxu0 0
        %1580 = vmatpush1.bf16.msra.mxu0 0
        %1581 = vmatprep.subr.bf16.mxu0 0
        %1582 = vmatpush1.bf16.msra.mxu0 0
        %1583 = vmatprep.subr.bf16.mxu0 0
        %1584 = vmatpush1.bf16.msra.mxu0 0
        %1585 = vmatprep.subr.bf16.mxu0 0
        %1586 = vmatpush1.bf16.msra.mxu0 0
        %1587 = vmatprep.subr.bf16.mxu0 0
        %1588 = vmatpush1.bf16.msra.mxu0 0
        %1589 = vmatprep.subr.bf16.mxu0 0
        %1590 = vmatpush1.bf16.msra.mxu0 0
        %1591 = vmatprep.mubr.bf16.mxu0 0
        %1592 = vmatmul.mubr.bf16.gmra.mrb[0].mxu0 %v1411
        %v1593 = vpop.f32.mrb[0].mxu0
        %v1594 = vadd.f32 0.0, %v1593
        %v1595 = vpop.f32.mrb[0].mxu0
        %v1596 = vadd.f32 0.0, %v1595
        %v1597 = vpop.f32.mrb[0].mxu0
        %v1598 = vadd.f32 0.0, %v1597
        %v1599 = vpop.f32.mrb[0].mxu0
        %v1600 = vadd.f32 0.0, %v1599
        %1601 = vmatprep.mubr.bf16.mxu0 0
        %1602 = vmatmul.mubr.bf16.gmra.mrb[0].mxu0 %v1414
        %v1603 = vpop.f32.mrb[0].mxu0
        %v1604 = vadd.f32 0.0, %v1603
        %v1605 = vpop.f32.mrb[0].mxu0
        %v1606 = vadd.f32 0.0, %v1605
        %v1607 = vpop.f32.mrb[0].mxu0
        %v1608 = vadd.f32 0.0, %v1607
        %v1609 = vpop.f32.mrb[0].mxu0
        %v1610 = vadd.f32 0.0, %v1609
        %1611 = vmatprep.mubr.bf16.mxu0 0
        %1612 = vmatmul.mubr.bf16.gmra.mrb[0].mxu0 %v1417
        %v1613 = vpop.f32.mrb[0].mxu0
        %v1614 = vadd.f32 0.0, %v1613
        %v1615 = vpop.f32.mrb[0].mxu0
        %v1616 = vadd.f32 0.0, %v1615
        %v1617 = vpop.f32.mrb[0].mxu0
        %v1618 = vadd.f32 0.0, %v1617
        %v1619 = vpop.f32.mrb[0].mxu0
        %v1620 = vadd.f32 0.0, %v1619
        %1621 = vmatprep.mubr.bf16.mxu0 0
        %1622 = vmatmul.mubr.bf16.gmra.mrb[0].mxu0 %v1420
        %v1623 = vpop.f32.mrb[0].mxu0
        %v1624 = vadd.f32 0.0, %v1623
        %v1625 = vpop.f32.mrb[0].mxu0
        %v1626 = vadd.f32 0.0, %v1625
        %v1627 = vpop.f32.mrb[0].mxu0
        %v1628 = vadd.f32 0.0, %v1627
        %v1629 = vpop.f32.mrb[0].mxu0
        %v1630 = vadd.f32 0.0, %v1629
        %1631 = vmatprep.mubr.bf16.mxu0 0
        %1632 = vmatmul.mubr.bf16.gmra.mrb[0].mxu0 %v1423
        %v1633 = vpop.f32.mrb[0].mxu0
        %v1634 = vadd.f32 0.0, %v1633
        %v1635 = vpop.f32.mrb[0].mxu0
        %v1636 = vadd.f32 0.0, %v1635
        %v1637 = vpop.f32.mrb[0].mxu0
        %v1638 = vadd.f32 0.0, %v1637
        %v1639 = vpop.f32.mrb[0].mxu0
        %v1640 = vadd.f32 0.0, %v1639
        %1641 = vmatprep.mubr.bf16.mxu0 0
        %1642 = vmatmul.mubr.bf16.gmra.mrb[0].mxu0 %v1426
        %v1643 = vpop.f32.mrb[0].mxu0
        %v1644 = vadd.f32 0.0, %v1643
        %v1645 = vpop.f32.mrb[0].mxu0
        %v1646 = vadd.f32 0.0, %v1645
        %v1647 = vpop.f32.mrb[0].mxu0
        %v1648 = vadd.f32 0.0, %v1647
        %v1649 = vpop.f32.mrb[0].mxu0
        %v1650 = vadd.f32 0.0, %v1649
        %1651 = vmatprep.mubr.bf16.mxu0 0
        %1652 = vmatmul.mubr.bf16.gmra.mrb[0].mxu0 %v1429
        %v1653 = vpop.f32.mrb[0].mxu0
        %v1654 = vadd.f32 0.0, %v1653
        %v1655 = vpop.f32.mrb[0].mxu0
        %v1656 = vadd.f32 0.0, %v1655
        %v1657 = vpop.f32.mrb[0].mxu0
        %v1658 = vadd.f32 0.0, %v1657
        %v1659 = vpop.f32.mrb[0].mxu0
        %v1660 = vadd.f32 0.0, %v1659
        %1661 = vmatprep.mubr.bf16.mxu0 0
        %1662 = vmatmul.mubr.bf16.gmra.mrb[0].mxu0 %v1432
        %v1663 = vpop.f32.mrb[0].mxu0
        %v1664 = vadd.f32 0.0, %v1663
        %v1665 = vpop.f32.mrb[0].mxu0
        %v1666 = vadd.f32 0.0, %v1665
        %v1667 = vpop.f32.mrb[0].mxu0
        %v1668 = vadd.f32 0.0, %v1667
        %v1669 = vpop.f32.mrb[0].mxu0
        %v1670 = vadd.f32 0.0, %v1669
        %1671 = vdwg.mxu0
        %v1672 = vadd.f32 %v1043, %v1481
        %v1673 = vadd.f32 %v1045, %v1483
        %v1674 = vadd.f32 %v1156, %v1594
        %v1675 = vadd.f32 %v1158, %v1596
        %v1676 = vadd.f32 %v1047, %v1485
        %v1677 = vadd.f32 %v1049, %v1487
        %v1678 = vadd.f32 %v1160, %v1598
        %v1679 = vadd.f32 %v1162, %v1600
        %v1680 = vadd.f32 %v1053, %v1491
        %v1681 = vadd.f32 %v1055, %v1493
        %v1682 = vadd.f32 %v1166, %v1604
        %v1683 = vadd.f32 %v1168, %v1606
        %v1684 = vadd.f32 %v1057, %v1495
        %v1685 = vadd.f32 %v1059, %v1497
        %v1686 = vadd.f32 %v1170, %v1608
        %v1687 = vadd.f32 %v1172, %v1610
        %v1688 = vadd.f32 %v1063, %v1501
        %v1689 = vadd.f32 %v1065, %v1503
        %v1690 = vadd.f32 %v1176, %v1614
        %v1691 = vadd.f32 %v1178, %v1616
        %v1692 = vadd.f32 %v1067, %v1505
        %v1693 = vadd.f32 %v1069, %v1507
        %v1694 = vadd.f32 %v1180, %v1618
        %v1695 = vadd.f32 %v1182, %v1620
        %v1696 = vadd.f32 %v1073, %v1511
        %v1697 = vadd.f32 %v1075, %v1513
        %v1698 = vadd.f32 %v1186, %v1624
        %v1699 = vadd.f32 %v1188, %v1626
        %v1700 = vadd.f32 %v1077, %v1515
        %v1701 = vadd.f32 %v1079, %v1517
        %v1702 = vadd.f32 %v1190, %v1628
        %v1703 = vadd.f32 %v1192, %v1630
        %v1704 = vadd.f32 %v1083, %v1521
        %v1705 = vadd.f32 %v1085, %v1523
        %v1706 = vadd.f32 %v1196, %v1634
        %v1707 = vadd.f32 %v1198, %v1636
        %v1708 = vadd.f32 %v1087, %v1525
        %v1709 = vadd.f32 %v1089, %v1527
        %v1710 = vadd.f32 %v1200, %v1638
        %v1711 = vadd.f32 %v1202, %v1640
        %v1712 = vadd.f32 %v1093, %v1531
        %v1713 = vadd.f32 %v1095, %v1533
        %v1714 = vadd.f32 %v1206, %v1644
        %v1715 = vadd.f32 %v1208, %v1646
        %v1716 = vadd.f32 %v1097, %v1535
        %v1717 = vadd.f32 %v1099, %v1537
        %v1718 = vadd.f32 %v1210, %v1648
        %v1719 = vadd.f32 %v1212, %v1650
        %v1720 = vadd.f32 %v1103, %v1541
        %v1721 = vadd.f32 %v1105, %v1543
        %v1722 = vadd.f32 %v1216, %v1654
        %v1723 = vadd.f32 %v1218, %v1656
        %v1724 = vadd.f32 %v1107, %v1545
        %v1725 = vadd.f32 %v1109, %v1547
        %v1726 = vadd.f32 %v1220, %v1658
        %v1727 = vadd.f32 %v1222, %v1660
        %v1728 = vadd.f32 %v1113, %v1551
        %v1729 = vadd.f32 %v1115, %v1553
        %v1730 = vadd.f32 %v1226, %v1664
        %v1731 = vadd.f32 %v1228, %v1666
        %v1732 = vadd.f32 %v1117, %v1555
        %v1733 = vadd.f32 %v1119, %v1557
        %v1734 = vadd.f32 %v1230, %v1668
        %v1735 = vadd.f32 %v1232, %v1670
        %v1736 = vld [vmem:[%s2] sm:$0xf]
        %v1738 = vlaneseq
        %v1739 = vshrl.u32 %v1738, 7
        %v1740 = vsub.s32 0, %v1739
        %v1741 = vrot.slane %v1736, %v1740
        %v1742 = vlaneseq
        %v1743 = vshrl.u32 %v1742, 7
        %v1744 = vsub.s32 1, %v1743
        %v1745 = vrot.slane %v1736, %v1744
        %v1746 = vlaneseq
        %v1747 = vshrl.u32 %v1746, 7
        %v1748 = vsub.s32 2, %v1747
        %v1749 = vrot.slane %v1736, %v1748
        %v1750 = vlaneseq
        %v1751 = vshrl.u32 %v1750, 7
        %v1752 = vsub.s32 3, %v1751
        %v1753 = vrot.slane %v1736, %v1752
        %v1758 = vadd.f32 %v1672, %v1741
        %v1759 = vadd.f32 %v1673, %v1745
        %v1760 = vadd.f32 %v1674, %v1749
        %v1761 = vadd.f32 %v1675, %v1753
        %v1762 = vadd.f32 %v1676, %v1741
        %v1763 = vadd.f32 %v1677, %v1745
        %v1764 = vadd.f32 %v1678, %v1749
        %v1765 = vadd.f32 %v1679, %v1753
        %v1766 = vadd.f32 %v1680, %v1741
        %v1767 = vadd.f32 %v1681, %v1745
        %v1768 = vadd.f32 %v1682, %v1749
        %v1769 = vadd.f32 %v1683, %v1753
        %v1770 = vadd.f32 %v1684, %v1741
        %v1771 = vadd.f32 %v1685, %v1745
        %v1772 = vadd.f32 %v1686, %v1749
        %v1773 = vadd.f32 %v1687, %v1753
        %v1774 = vadd.f32 %v1688, %v1741
        %v1775 = vadd.f32 %v1689, %v1745
        %v1776 = vadd.f32 %v1690, %v1749
        %v1777 = vadd.f32 %v1691, %v1753
        %v1778 = vadd.f32 %v1692, %v1741
        %v1779 = vadd.f32 %v1693, %v1745
        %v1780 = vadd.f32 %v1694, %v1749
        %v1781 = vadd.f32 %v1695, %v1753
        %v1782 = vadd.f32 %v1696, %v1741
        %v1783 = vadd.f32 %v1697, %v1745
        %v1784 = vadd.f32 %v1698, %v1749
        %v1785 = vadd.f32 %v1699, %v1753
        %v1786 = vadd.f32 %v1700, %v1741
        %v1787 = vadd.f32 %v1701, %v1745
        %v1788 = vadd.f32 %v1702, %v1749
        %v1789 = vadd.f32 %v1703, %v1753
        %v1790 = vadd.f32 %v1704, %v1741
        %v1791 = vadd.f32 %v1705, %v1745
        %v1792 = vadd.f32 %v1706, %v1749
        %v1793 = vadd.f32 %v1707, %v1753
        %v1794 = vadd.f32 %v1708, %v1741
        %v1795 = vadd.f32 %v1709, %v1745
        %v1796 = vadd.f32 %v1710, %v1749
        %v1797 = vadd.f32 %v1711, %v1753
        %v1798 = vadd.f32 %v1712, %v1741
        %v1799 = vadd.f32 %v1713, %v1745
        %v1800 = vadd.f32 %v1714, %v1749
        %v1801 = vadd.f32 %v1715, %v1753
        %v1802 = vadd.f32 %v1716, %v1741
        %v1803 = vadd.f32 %v1717, %v1745
        %v1804 = vadd.f32 %v1718, %v1749
        %v1805 = vadd.f32 %v1719, %v1753
        %v1806 = vadd.f32 %v1720, %v1741
        %v1807 = vadd.f32 %v1721, %v1745
        %v1808 = vadd.f32 %v1722, %v1749
        %v1809 = vadd.f32 %v1723, %v1753
        %v1810 = vadd.f32 %v1724, %v1741
        %v1811 = vadd.f32 %v1725, %v1745
        %v1812 = vadd.f32 %v1726, %v1749
        %v1813 = vadd.f32 %v1727, %v1753
        %v1814 = vadd.f32 %v1728, %v1741
        %v1815 = vadd.f32 %v1729, %v1745
        %v1816 = vadd.f32 %v1730, %v1749
        %v1817 = vadd.f32 %v1731, %v1753
        %v1818 = vadd.f32 %v1732, %v1741
        %v1819 = vadd.f32 %v1733, %v1745
        %v1820 = vadd.f32 %v1734, %v1749
        %v1821 = vadd.f32 %v1735, %v1753
        %v1822 = vmax.f32 %v1758, 0.0
        %v1823 = vmax.f32 %v1759, 0.0
        %v1824 = vmax.f32 %v1760, 0.0
        %v1825 = vmax.f32 %v1761, 0.0
        %v1826 = vmax.f32 %v1762, 0.0
        %v1827 = vmax.f32 %v1763, 0.0
        %v1828 = vmax.f32 %v1764, 0.0
        %v1829 = vmax.f32 %v1765, 0.0
        %v1830 = vmax.f32 %v1766, 0.0
        %v1831 = vmax.f32 %v1767, 0.0
        %v1832 = vmax.f32 %v1768, 0.0
        %v1833 = vmax.f32 %v1769, 0.0
        %v1834 = vmax.f32 %v1770, 0.0
        %v1835 = vmax.f32 %v1771, 0.0
        %v1836 = vmax.f32 %v1772, 0.0
        %v1837 = vmax.f32 %v1773, 0.0
        %v1838 = vmax.f32 %v1774, 0.0
        %v1839 = vmax.f32 %v1775, 0.0
        %v1840 = vmax.f32 %v1776, 0.0
        %v1841 = vmax.f32 %v1777, 0.0
        %v1842 = vmax.f32 %v1778, 0.0
        %v1843 = vmax.f32 %v1779, 0.0
        %v1844 = vmax.f32 %v1780, 0.0
        %v1845 = vmax.f32 %v1781, 0.0
        %v1846 = vmax.f32 %v1782, 0.0
        %v1847 = vmax.f32 %v1783, 0.0
        %v1848 = vmax.f32 %v1784, 0.0
        %v1849 = vmax.f32 %v1785, 0.0
        %v1850 = vmax.f32 %v1786, 0.0
        %v1851 = vmax.f32 %v1787, 0.0
        %v1852 = vmax.f32 %v1788, 0.0
        %v1853 = vmax.f32 %v1789, 0.0
        %v1854 = vmax.f32 %v1790, 0.0
        %v1855 = vmax.f32 %v1791, 0.0
        %v1856 = vmax.f32 %v1792, 0.0
        %v1857 = vmax.f32 %v1793, 0.0
        %v1858 = vmax.f32 %v1794, 0.0
        %v1859 = vmax.f32 %v1795, 0.0
        %v1860 = vmax.f32 %v1796, 0.0
        %v1861 = vmax.f32 %v1797, 0.0
        %v1862 = vmax.f32 %v1798, 0.0
        %v1863 = vmax.f32 %v1799, 0.0
        %v1864 = vmax.f32 %v1800, 0.0
        %v1865 = vmax.f32 %v1801, 0.0
        %v1866 = vmax.f32 %v1802, 0.0
        %v1867 = vmax.f32 %v1803, 0.0
        %v1868 = vmax.f32 %v1804, 0.0
        %v1869 = vmax.f32 %v1805, 0.0
        %v1870 = vmax.f32 %v1806, 0.0
        %v1871 = vmax.f32 %v1807, 0.0
        %v1872 = vmax.f32 %v1808, 0.0
        %v1873 = vmax.f32 %v1809, 0.0
        %v1874 = vmax.f32 %v1810, 0.0
        %v1875 = vmax.f32 %v1811, 0.0
        %v1876 = vmax.f32 %v1812, 0.0
        %v1877 = vmax.f32 %v1813, 0.0
        %v1878 = vmax.f32 %v1814, 0.0
        %v1879 = vmax.f32 %v1815, 0.0
        %v1880 = vmax.f32 %v1816, 0.0
        %v1881 = vmax.f32 %v1817, 0.0
        %v1882 = vmax.f32 %v1818, 0.0
        %v1883 = vmax.f32 %v1819, 0.0
        %v1884 = vmax.f32 %v1820, 0.0
        %v1885 = vmax.f32 %v1821, 0.0
        %1886 = vst [vmem:[%s239] sm:$0xff] %v1822
        %1887 = vst [vmem:[%s239 + $0x8] sm:$0xff] %v1823
        %1888 = vst [vmem:[%s239 + $0x10] sm:$0xff] %v1824
        %1889 = vst [vmem:[%s239 + $0x18] sm:$0xff] %v1825
        %1890 = vst [vmem:[%s239 + $0x20] sm:$0xff] %v1826
        %1891 = vst [vmem:[%s239 + $0x28] sm:$0xff] %v1827
        %1892 = vst [vmem:[%s239 + $0x30] sm:$0xff] %v1828
        %1893 = vst [vmem:[%s239 + $0x38] sm:$0xff] %v1829
        %1894 = vst [vmem:[%s239 + $0x40] sm:$0xff] %v1830
        %1895 = vst [vmem:[%s239 + $0x48] sm:$0xff] %v1831
        %1896 = vst [vmem:[%s239 + $0x50] sm:$0xff] %v1832
        %1897 = vst [vmem:[%s239 + $0x58] sm:$0xff] %v1833
        %1898 = vst [vmem:[%s239 + $0x60] sm:$0xff] %v1834
        %1899 = vst [vmem:[%s239 + $0x68] sm:$0xff] %v1835
        %1900 = vst [vmem:[%s239 + $0x70] sm:$0xff] %v1836
        %1901 = vst [vmem:[%s239 + $0x78] sm:$0xff] %v1837
        %1902 = vst [vmem:[%s239 + $0x80] sm:$0xff] %v1838
        %1903 = vst [vmem:[%s239 + $0x88] sm:$0xff] %v1839
        %1904 = vst [vmem:[%s239 + $0x90] sm:$0xff] %v1840
        %1905 = vst [vmem:[%s239 + $0x98] sm:$0xff] %v1841
        %1906 = vst [vmem:[%s239 + $0xa0] sm:$0xff] %v1842
        %1907 = vst [vmem:[%s239 + $0xa8] sm:$0xff] %v1843
        %1908 = vst [vmem:[%s239 + $0xb0] sm:$0xff] %v1844
        %1909 = vst [vmem:[%s239 + $0xb8] sm:$0xff] %v1845
        %1910 = vst [vmem:[%s239 + $0xc0] sm:$0xff] %v1846
        %1911 = vst [vmem:[%s239 + $0xc8] sm:$0xff] %v1847
        %1912 = vst [vmem:[%s239 + $0xd0] sm:$0xff] %v1848
        %1913 = vst [vmem:[%s239 + $0xd8] sm:$0xff] %v1849
        %1914 = vst [vmem:[%s239 + $0xe0] sm:$0xff] %v1850
        %1915 = vst [vmem:[%s239 + $0xe8] sm:$0xff] %v1851
        %1916 = vst [vmem:[%s239 + $0xf0] sm:$0xff] %v1852
        %1917 = vst [vmem:[%s239 + $0xf8] sm:$0xff] %v1853
        %1918 = vst [vmem:[%s239 + $0x100] sm:$0xff] %v1854
        %1919 = vst [vmem:[%s239 + $0x108] sm:$0xff] %v1855
        %1920 = vst [vmem:[%s239 + $0x110] sm:$0xff] %v1856
        %1921 = vst [vmem:[%s239 + $0x118] sm:$0xff] %v1857
        %1922 = vst [vmem:[%s239 + $0x120] sm:$0xff] %v1858
        %1923 = vst [vmem:[%s239 + $0x128] sm:$0xff] %v1859
        %1924 = vst [vmem:[%s239 + $0x130] sm:$0xff] %v1860
        %1925 = vst [vmem:[%s239 + $0x138] sm:$0xff] %v1861
        %1926 = vst [vmem:[%s239 + $0x140] sm:$0xff] %v1862
        %1927 = vst [vmem:[%s239 + $0x148] sm:$0xff] %v1863
        %1928 = vst [vmem:[%s239 + $0x150] sm:$0xff] %v1864
        %1929 = vst [vmem:[%s239 + $0x158] sm:$0xff] %v1865
        %1930 = vst [vmem:[%s239 + $0x160] sm:$0xff] %v1866
        %1931 = vst [vmem:[%s239 + $0x168] sm:$0xff] %v1867
        %1932 = vst [vmem:[%s239 + $0x170] sm:$0xff] %v1868
        %1933 = vst [vmem:[%s239 + $0x178] sm:$0xff] %v1869
        %1934 = vst [vmem:[%s239 + $0x180] sm:$0xff] %v1870
        %1935 = vst [vmem:[%s239 + $0x188] sm:$0xff] %v1871
        %1936 = vst [vmem:[%s239 + $0x190] sm:$0xff] %v1872
        %1937 = vst [vmem:[%s239 + $0x198] sm:$0xff] %v1873
        %1938 = vst [vmem:[%s239 + $0x1a0] sm:$0xff] %v1874
        %1939 = vst [vmem:[%s239 + $0x1a8] sm:$0xff] %v1875
        %1940 = vst [vmem:[%s239 + $0x1b0] sm:$0xff] %v1876
        %1941 = vst [vmem:[%s239 + $0x1b8] sm:$0xff] %v1877
        %1942 = vst [vmem:[%s239 + $0x1c0] sm:$0xff] %v1878
        %1943 = vst [vmem:[%s239 + $0x1c8] sm:$0xff] %v1879
        %1944 = vst [vmem:[%s239 + $0x1d0] sm:$0xff] %v1880
        %1945 = vst [vmem:[%s239 + $0x1d8] sm:$0xff] %v1881
        %1946 = vst [vmem:[%s239 + $0x1e0] sm:$0xff] %v1882
        %1947 = vst [vmem:[%s239 + $0x1e8] sm:$0xff] %v1883
        %1948 = vst [vmem:[%s239 + $0x1f0] sm:$0xff] %v1884
        %1949 = vst [vmem:[%s239 + $0x1f8] sm:$0xff] %v1885
        %v1950 = vadd.f32 %v1822, %v1826
        %v1951 = vrot.slane %v1950, 4
        %v1952 = vadd.f32 %v1950, %v1951
        %v1953 = vrot.slane %v1952, 2
        %v1954 = vadd.f32 %v1952, %v1953
        %v1955 = vrot.slane %v1954, 1
        %v1956 = vadd.f32 %v1954, %v1955
        %v1957 = vadd.f32 %v1823, %v1827
        %v1958 = vrot.slane %v1957, 4
        %v1959 = vadd.f32 %v1957, %v1958
        %v1960 = vrot.slane %v1959, 2
        %v1961 = vadd.f32 %v1959, %v1960
        %v1962 = vrot.slane %v1961, 1
        %v1963 = vadd.f32 %v1961, %v1962
        %v1964 = vadd.f32 %v1824, %v1828
        %v1965 = vrot.slane %v1964, 4
        %v1966 = vadd.f32 %v1964, %v1965
        %v1967 = vrot.slane %v1966, 2
        %v1968 = vadd.f32 %v1966, %v1967
        %v1969 = vrot.slane %v1968, 1
        %v1970 = vadd.f32 %v1968, %v1969
        %v1971 = vadd.f32 %v1825, %v1829
        %v1972 = vrot.slane %v1971, 4
        %v1973 = vadd.f32 %v1971, %v1972
        %v1974 = vrot.slane %v1973, 2
        %v1975 = vadd.f32 %v1973, %v1974
        %v1976 = vrot.slane %v1975, 1
        %v1977 = vadd.f32 %v1975, %v1976
        %v1978 = vadd.f32 %v1830, %v1834
        %v1979 = vrot.slane %v1978, 4
        %v1980 = vadd.f32 %v1978, %v1979
        %v1981 = vrot.slane %v1980, 2
        %v1982 = vadd.f32 %v1980, %v1981
        %v1983 = vrot.slane %v1982, 1
        %v1984 = vadd.f32 %v1982, %v1983
        %v1985 = vadd.f32 %v1831, %v1835
        %v1986 = vrot.slane %v1985, 4
        %v1987 = vadd.f32 %v1985, %v1986
        %v1988 = vrot.slane %v1987, 2
        %v1989 = vadd.f32 %v1987, %v1988
        %v1990 = vrot.slane %v1989, 1
        %v1991 = vadd.f32 %v1989, %v1990
        %v1992 = vadd.f32 %v1832, %v1836
        %v1993 = vrot.slane %v1992, 4
        %v1994 = vadd.f32 %v1992, %v1993
        %v1995 = vrot.slane %v1994, 2
        %v1996 = vadd.f32 %v1994, %v1995
        %v1997 = vrot.slane %v1996, 1
        %v1998 = vadd.f32 %v1996, %v1997
        %v1999 = vadd.f32 %v1833, %v1837
        %v2000 = vrot.slane %v1999, 4
        %v2001 = vadd.f32 %v1999, %v2000
        %v2002 = vrot.slane %v2001, 2
        %v2003 = vadd.f32 %v2001, %v2002
        %v2004 = vrot.slane %v2003, 1
        %v2005 = vadd.f32 %v2003, %v2004
        %v2006 = vadd.f32 %v1838, %v1842
        %v2007 = vrot.slane %v2006, 4
        %v2008 = vadd.f32 %v2006, %v2007
        %v2009 = vrot.slane %v2008, 2
        %v2010 = vadd.f32 %v2008, %v2009
        %v2011 = vrot.slane %v2010, 1
        %v2012 = vadd.f32 %v2010, %v2011
        %v2013 = vadd.f32 %v1839, %v1843
        %v2014 = vrot.slane %v2013, 4
        %v2015 = vadd.f32 %v2013, %v2014
        %v2016 = vrot.slane %v2015, 2
        %v2017 = vadd.f32 %v2015, %v2016
        %v2018 = vrot.slane %v2017, 1
        %v2019 = vadd.f32 %v2017, %v2018
        %v2020 = vadd.f32 %v1840, %v1844
        %v2021 = vrot.slane %v2020, 4
        %v2022 = vadd.f32 %v2020, %v2021
        %v2023 = vrot.slane %v2022, 2
        %v2024 = vadd.f32 %v2022, %v2023
        %v2025 = vrot.slane %v2024, 1
        %v2026 = vadd.f32 %v2024, %v2025
        %v2027 = vadd.f32 %v1841, %v1845
        %v2028 = vrot.slane %v2027, 4
        %v2029 = vadd.f32 %v2027, %v2028
        %v2030 = vrot.slane %v2029, 2
        %v2031 = vadd.f32 %v2029, %v2030
        %v2032 = vrot.slane %v2031, 1
        %v2033 = vadd.f32 %v2031, %v2032
        %v2034 = vadd.f32 %v1846, %v1850
        %v2035 = vrot.slane %v2034, 4
        %v2036 = vadd.f32 %v2034, %v2035
        %v2037 = vrot.slane %v2036, 2
        %v2038 = vadd.f32 %v2036, %v2037
        %v2039 = vrot.slane %v2038, 1
        %v2040 = vadd.f32 %v2038, %v2039
        %v2041 = vadd.f32 %v1847, %v1851
        %v2042 = vrot.slane %v2041, 4
        %v2043 = vadd.f32 %v2041, %v2042
        %v2044 = vrot.slane %v2043, 2
        %v2045 = vadd.f32 %v2043, %v2044
        %v2046 = vrot.slane %v2045, 1
        %v2047 = vadd.f32 %v2045, %v2046
        %v2048 = vadd.f32 %v1848, %v1852
        %v2049 = vrot.slane %v2048, 4
        %v2050 = vadd.f32 %v2048, %v2049
        %v2051 = vrot.slane %v2050, 2
        %v2052 = vadd.f32 %v2050, %v2051
        %v2053 = vrot.slane %v2052, 1
        %v2054 = vadd.f32 %v2052, %v2053
        %v2055 = vadd.f32 %v1849, %v1853
        %v2056 = vrot.slane %v2055, 4
        %v2057 = vadd.f32 %v2055, %v2056
        %v2058 = vrot.slane %v2057, 2
        %v2059 = vadd.f32 %v2057, %v2058
        %v2060 = vrot.slane %v2059, 1
        %v2061 = vadd.f32 %v2059, %v2060
        %v2062 = vadd.f32 %v1854, %v1858
        %v2063 = vrot.slane %v2062, 4
        %v2064 = vadd.f32 %v2062, %v2063
        %v2065 = vrot.slane %v2064, 2
        %v2066 = vadd.f32 %v2064, %v2065
        %v2067 = vrot.slane %v2066, 1
        %v2068 = vadd.f32 %v2066, %v2067
        %v2069 = vadd.f32 %v1855, %v1859
        %v2070 = vrot.slane %v2069, 4
        %v2071 = vadd.f32 %v2069, %v2070
        %v2072 = vrot.slane %v2071, 2
        %v2073 = vadd.f32 %v2071, %v2072
        %v2074 = vrot.slane %v2073, 1
        %v2075 = vadd.f32 %v2073, %v2074
        %v2076 = vadd.f32 %v1856, %v1860
        %v2077 = vrot.slane %v2076, 4
        %v2078 = vadd.f32 %v2076, %v2077
        %v2079 = vrot.slane %v2078, 2
        %v2080 = vadd.f32 %v2078, %v2079
        %v2081 = vrot.slane %v2080, 1
        %v2082 = vadd.f32 %v2080, %v2081
        %v2083 = vadd.f32 %v1857, %v1861
        %v2084 = vrot.slane %v2083, 4
        %v2085 = vadd.f32 %v2083, %v2084
        %v2086 = vrot.slane %v2085, 2
        %v2087 = vadd.f32 %v2085, %v2086
        %v2088 = vrot.slane %v2087, 1
        %v2089 = vadd.f32 %v2087, %v2088
        %v2090 = vadd.f32 %v1862, %v1866
        %v2091 = vrot.slane %v2090, 4
        %v2092 = vadd.f32 %v2090, %v2091
        %v2093 = vrot.slane %v2092, 2
        %v2094 = vadd.f32 %v2092, %v2093
        %v2095 = vrot.slane %v2094, 1
        %v2096 = vadd.f32 %v2094, %v2095
        %v2097 = vadd.f32 %v1863, %v1867
        %v2098 = vrot.slane %v2097, 4
        %v2099 = vadd.f32 %v2097, %v2098
        %v2100 = vrot.slane %v2099, 2
        %v2101 = vadd.f32 %v2099, %v2100
        %v2102 = vrot.slane %v2101, 1
        %v2103 = vadd.f32 %v2101, %v2102
        %v2104 = vadd.f32 %v1864, %v1868
        %v2105 = vrot.slane %v2104, 4
        %v2106 = vadd.f32 %v2104, %v2105
        %v2107 = vrot.slane %v2106, 2
        %v2108 = vadd.f32 %v2106, %v2107
        %v2109 = vrot.slane %v2108, 1
        %v2110 = vadd.f32 %v2108, %v2109
        %v2111 = vadd.f32 %v1865, %v1869
        %v2112 = vrot.slane %v2111, 4
        %v2113 = vadd.f32 %v2111, %v2112
        %v2114 = vrot.slane %v2113, 2
        %v2115 = vadd.f32 %v2113, %v2114
        %v2116 = vrot.slane %v2115, 1
        %v2117 = vadd.f32 %v2115, %v2116
        %v2118 = vadd.f32 %v1870, %v1874
        %v2119 = vrot.slane %v2118, 4
        %v2120 = vadd.f32 %v2118, %v2119
        %v2121 = vrot.slane %v2120, 2
        %v2122 = vadd.f32 %v2120, %v2121
        %v2123 = vrot.slane %v2122, 1
        %v2124 = vadd.f32 %v2122, %v2123
        %v2125 = vadd.f32 %v1871, %v1875
        %v2126 = vrot.slane %v2125, 4
        %v2127 = vadd.f32 %v2125, %v2126
        %v2128 = vrot.slane %v2127, 2
        %v2129 = vadd.f32 %v2127, %v2128
        %v2130 = vrot.slane %v2129, 1
        %v2131 = vadd.f32 %v2129, %v2130
        %v2132 = vadd.f32 %v1872, %v1876
        %v2133 = vrot.slane %v2132, 4
        %v2134 = vadd.f32 %v2132, %v2133
        %v2135 = vrot.slane %v2134, 2
        %v2136 = vadd.f32 %v2134, %v2135
        %v2137 = vrot.slane %v2136, 1
        %v2138 = vadd.f32 %v2136, %v2137
        %v2139 = vadd.f32 %v1873, %v1877
        %v2140 = vrot.slane %v2139, 4
        %v2141 = vadd.f32 %v2139, %v2140
        %v2142 = vrot.slane %v2141, 2
        %v2143 = vadd.f32 %v2141, %v2142
        %v2144 = vrot.slane %v2143, 1
        %v2145 = vadd.f32 %v2143, %v2144
        %v2146 = vadd.f32 %v1878, %v1882
        %v2147 = vrot.slane %v2146, 4
        %v2148 = vadd.f32 %v2146, %v2147
        %v2149 = vrot.slane %v2148, 2
        %v2150 = vadd.f32 %v2148, %v2149
        %v2151 = vrot.slane %v2150, 1
        %v2152 = vadd.f32 %v2150, %v2151
        %v2153 = vadd.f32 %v1879, %v1883
        %v2154 = vrot.slane %v2153, 4
        %v2155 = vadd.f32 %v2153, %v2154
        %v2156 = vrot.slane %v2155, 2
        %v2157 = vadd.f32 %v2155, %v2156
        %v2158 = vrot.slane %v2157, 1
        %v2159 = vadd.f32 %v2157, %v2158
        %v2160 = vadd.f32 %v1880, %v1884
        %v2161 = vrot.slane %v2160, 4
        %v2162 = vadd.f32 %v2160, %v2161
        %v2163 = vrot.slane %v2162, 2
        %v2164 = vadd.f32 %v2162, %v2163
        %v2165 = vrot.slane %v2164, 1
        %v2166 = vadd.f32 %v2164, %v2165
        %v2167 = vadd.f32 %v1881, %v1885
        %v2168 = vrot.slane %v2167, 4
        %v2169 = vadd.f32 %v2167, %v2168
        %v2170 = vrot.slane %v2169, 2
        %v2171 = vadd.f32 %v2169, %v2170
        %v2172 = vrot.slane %v2171, 1
        %v2173 = vadd.f32 %v2171, %v2172
        %v2174 = vld [vmem:[#allocation2] sm:$0xff]
        %v2175 = vld [vmem:[#allocation2 + $0x8] sm:$0xff]
        %v2176 = vld [vmem:[#allocation2 + $0x10] sm:$0xff]
        %v2177 = vld [vmem:[#allocation2 + $0x18] sm:$0xff]
        %v2178 = vld [vmem:[#allocation2 + $0x20] sm:$0xff]
        %v2179 = vld [vmem:[#allocation2 + $0x28] sm:$0xff]
        %v2180 = vld [vmem:[#allocation2 + $0x30] sm:$0xff]
        %v2181 = vld [vmem:[#allocation2 + $0x38] sm:$0xff]
        %v2182 = vld [vmem:[#allocation2 + $0x40] sm:$0xff]
        %v2183 = vld [vmem:[#allocation2 + $0x48] sm:$0xff]
        %v2184 = vld [vmem:[#allocation2 + $0x50] sm:$0xff]
        %v2185 = vld [vmem:[#allocation2 + $0x58] sm:$0xff]
        %v2186 = vld [vmem:[#allocation2 + $0x60] sm:$0xff]
        %v2187 = vld [vmem:[#allocation2 + $0x68] sm:$0xff]
        %v2188 = vld [vmem:[#allocation2 + $0x70] sm:$0xff]
        %v2189 = vld [vmem:[#allocation2 + $0x78] sm:$0xff]
        %v2190 = vld [vmem:[#allocation2 + $0x80] sm:$0xff]
        %v2191 = vld [vmem:[#allocation2 + $0x88] sm:$0xff]
        %v2192 = vld [vmem:[#allocation2 + $0x90] sm:$0xff]
        %v2193 = vld [vmem:[#allocation2 + $0x98] sm:$0xff]
        %v2194 = vld [vmem:[#allocation2 + $0xa0] sm:$0xff]
        %v2195 = vld [vmem:[#allocation2 + $0xa8] sm:$0xff]
        %v2196 = vld [vmem:[#allocation2 + $0xb0] sm:$0xff]
        %v2197 = vld [vmem:[#allocation2 + $0xb8] sm:$0xff]
        %v2198 = vld [vmem:[#allocation2 + $0xc0] sm:$0xff]
        %v2199 = vld [vmem:[#allocation2 + $0xc8] sm:$0xff]
        %v2200 = vld [vmem:[#allocation2 + $0xd0] sm:$0xff]
        %v2201 = vld [vmem:[#allocation2 + $0xd8] sm:$0xff]
        %v2202 = vld [vmem:[#allocation2 + $0xe0] sm:$0xff]
        %v2203 = vld [vmem:[#allocation2 + $0xe8] sm:$0xff]
        %v2204 = vld [vmem:[#allocation2 + $0xf0] sm:$0xff]
        %v2205 = vld [vmem:[#allocation2 + $0xf8] sm:$0xff]
        %v2206 = vld [vmem:[#allocation2 + $0x100] sm:$0xff]
        %v2207 = vld [vmem:[#allocation2 + $0x108] sm:$0xff]
        %v2208 = vld [vmem:[#allocation2 + $0x110] sm:$0xff]
        %v2209 = vld [vmem:[#allocation2 + $0x118] sm:$0xff]
        %v2210 = vld [vmem:[#allocation2 + $0x120] sm:$0xff]
        %v2211 = vld [vmem:[#allocation2 + $0x128] sm:$0xff]
        %v2212 = vld [vmem:[#allocation2 + $0x130] sm:$0xff]
        %v2213 = vld [vmem:[#allocation2 + $0x138] sm:$0xff]
        %v2214 = vld [vmem:[#allocation2 + $0x140] sm:$0xff]
        %v2215 = vld [vmem:[#allocation2 + $0x148] sm:$0xff]
        %v2216 = vld [vmem:[#allocation2 + $0x150] sm:$0xff]
        %v2217 = vld [vmem:[#allocation2 + $0x158] sm:$0xff]
        %v2218 = vld [vmem:[#allocation2 + $0x160] sm:$0xff]
        %v2219 = vld [vmem:[#allocation2 + $0x168] sm:$0xff]
        %v2220 = vld [vmem:[#allocation2 + $0x170] sm:$0xff]
        %v2221 = vld [vmem:[#allocation2 + $0x178] sm:$0xff]
        %v2222 = vld [vmem:[#allocation2 + $0x180] sm:$0xff]
        %v2223 = vld [vmem:[#allocation2 + $0x188] sm:$0xff]
        %v2224 = vld [vmem:[#allocation2 + $0x190] sm:$0xff]
        %v2225 = vld [vmem:[#allocation2 + $0x198] sm:$0xff]
        %v2226 = vld [vmem:[#allocation2 + $0x1a0] sm:$0xff]
        %v2227 = vld [vmem:[#allocation2 + $0x1a8] sm:$0xff]
        %v2228 = vld [vmem:[#allocation2 + $0x1b0] sm:$0xff]
        %v2229 = vld [vmem:[#allocation2 + $0x1b8] sm:$0xff]
        %v2230 = vld [vmem:[#allocation2 + $0x1c0] sm:$0xff]
        %v2231 = vld [vmem:[#allocation2 + $0x1c8] sm:$0xff]
        %v2232 = vld [vmem:[#allocation2 + $0x1d0] sm:$0xff]
        %v2233 = vld [vmem:[#allocation2 + $0x1d8] sm:$0xff]
        %v2234 = vld [vmem:[#allocation2 + $0x1e0] sm:$0xff]
        %v2235 = vld [vmem:[#allocation2 + $0x1e8] sm:$0xff]
        %v2236 = vld [vmem:[#allocation2 + $0x1f0] sm:$0xff]
        %v2237 = vld [vmem:[#allocation2 + $0x1f8] sm:$0xff]
        %vm2270 = vcmask 1041409
        %v2271 = vsel %vm2270, %v1984, %v1956
        %vm2272 = vcmask 1042434
        %v2273 = vsel %vm2272, %v2012, %v2271
        %vm2274 = vcmask 1043459
        %v2275 = vsel %vm2274, %v2040, %v2273
        %vm2276 = vcmask 1044484
        %v2277 = vsel %vm2276, %v2068, %v2275
        %vm2278 = vcmask 1045509
        %v2279 = vsel %vm2278, %v2096, %v2277
        %vm2280 = vcmask 1046534
        %v2281 = vsel %vm2280, %v2124, %v2279
        %vm2282 = vcmask 1047559
        %v2283 = vsel %vm2282, %v2152, %v2281
        %v2284 = vsel %vm2270, %v1991, %v1963
        %v2285 = vsel %vm2272, %v2019, %v2284
        %v2286 = vsel %vm2274, %v2047, %v2285
        %v2287 = vsel %vm2276, %v2075, %v2286
        %v2288 = vsel %vm2278, %v2103, %v2287
        %v2289 = vsel %vm2280, %v2131, %v2288
        %v2290 = vsel %vm2282, %v2159, %v2289
        %v2291 = vsel %vm2270, %v1998, %v1970
        %v2292 = vsel %vm2272, %v2026, %v2291
        %v2293 = vsel %vm2274, %v2054, %v2292
        %v2294 = vsel %vm2276, %v2082, %v2293
        %v2295 = vsel %vm2278, %v2110, %v2294
        %v2296 = vsel %vm2280, %v2138, %v2295
        %v2297 = vsel %vm2282, %v2166, %v2296
        %v2298 = vsel %vm2270, %v2005, %v1977
        %v2299 = vsel %vm2272, %v2033, %v2298
        %v2300 = vsel %vm2274, %v2061, %v2299
        %v2301 = vsel %vm2276, %v2089, %v2300
        %v2302 = vsel %vm2278, %v2117, %v2301
        %v2303 = vsel %vm2280, %v2145, %v2302
        %v2304 = vsel %vm2282, %v2173, %v2303
        %2309 = vmatprep.subr.mxu0 0.0
        %2310 = vmatpush1.msra.mxu0 %v2174
        %2311 = vmatprep.subr.mxu0 0.0
        %2312 = vmatpush1.msra.mxu0 %v2175
        %2313 = vmatprep.subr.mxu0 0.0
        %2314 = vmatpush1.msra.mxu0 %v2176
        %2315 = vmatprep.subr.mxu0 0.0
        %2316 = vmatpush1.msra.mxu0 %v2177
        %2317 = vmatprep.subr.mxu0 0.0
        %2318 = vmatpush1.msra.mxu0 %v2178
        %2319 = vmatprep.subr.mxu0 0.0
        %2320 = vmatpush1.msra.mxu0 %v2179
        %2321 = vmatprep.subr.mxu0 0.0
        %2322 = vmatpush1.msra.mxu0 %v2180
        %2323 = vmatprep.subr.mxu0 0.0
        %2324 = vmatpush1.msra.mxu0 %v2181
        %2325 = vmatprep.subr.mxu0 0.0
        %2326 = vmatpush1.msra.mxu0 %v2182
        %2327 = vmatprep.subr.mxu0 0.0
        %2328 = vmatpush1.msra.mxu0 %v2183
        %2329 = vmatprep.subr.mxu0 0.0
        %2330 = vmatpush1.msra.mxu0 %v2184
        %2331 = vmatprep.subr.mxu0 0.0
        %2332 = vmatpush1.msra.mxu0 %v2185
        %2333 = vmatprep.subr.mxu0 0.0
        %2334 = vmatpush1.msra.mxu0 %v2186
        %2335 = vmatprep.subr.mxu0 0.0
        %2336 = vmatpush1.msra.mxu0 %v2187
        %2337 = vmatprep.subr.mxu0 0.0
        %2338 = vmatpush1.msra.mxu0 %v2188
        %2339 = vmatprep.subr.mxu0 0.0
        %2340 = vmatpush1.msra.mxu0 %v2189
        %2341 = vmatprep.subr.mxu0 0.0
        %2342 = vmatpush1.msra.mxu0 %v2190
        %2343 = vmatprep.subr.mxu0 0.0
        %2344 = vmatpush1.msra.mxu0 %v2191
        %2345 = vmatprep.subr.mxu0 0.0
        %2346 = vmatpush1.msra.mxu0 %v2192
        %2347 = vmatprep.subr.mxu0 0.0
        %2348 = vmatpush1.msra.mxu0 %v2193
        %2349 = vmatprep.subr.mxu0 0.0
        %2350 = vmatpush1.msra.mxu0 %v2194
        %2351 = vmatprep.subr.mxu0 0.0
        %2352 = vmatpush1.msra.mxu0 %v2195
        %2353 = vmatprep.subr.mxu0 0.0
        %2354 = vmatpush1.msra.mxu0 %v2196
        %2355 = vmatprep.subr.mxu0 0.0
        %2356 = vmatpush1.msra.mxu0 %v2197
        %2357 = vmatprep.subr.mxu0 0.0
        %2358 = vmatpush1.msra.mxu0 %v2198
        %2359 = vmatprep.subr.mxu0 0.0
        %2360 = vmatpush1.msra.mxu0 %v2199
        %2361 = vmatprep.subr.mxu0 0.0
        %2362 = vmatpush1.msra.mxu0 %v2200
        %2363 = vmatprep.subr.mxu0 0.0
        %2364 = vmatpush1.msra.mxu0 %v2201
        %2365 = vmatprep.subr.mxu0 0.0
        %2366 = vmatpush1.msra.mxu0 %v2202
        %2367 = vmatprep.subr.mxu0 0.0
        %2368 = vmatpush1.msra.mxu0 %v2203
        %2369 = vmatprep.subr.mxu0 0.0
        %2370 = vmatpush1.msra.mxu0 %v2204
        %2371 = vmatprep.subr.mxu0 0.0
        %2372 = vmatpush1.msra.mxu0 %v2205
        %2373 = vmatprep.mubr.f32.mxu0 %v2290
        %2374 = vmatmul.mubr.f32.gmra.mrb[0].mxu0 %v2283
        %v2375 = vpop.f32.mrb[0].mxu0
        %v2376 = vadd.f32 0.0, %v2375
        %v2377 = vpop.f32.mrb[0].mxu0
        %2378 = vdwg.mxu0
        %2379 = vmatprep.subr.mxu0 0.0
        %2380 = vmatpush1.msra.mxu0 %v2206
        %2381 = vmatprep.subr.mxu0 0.0
        %2382 = vmatpush1.msra.mxu0 %v2207
        %2383 = vmatprep.subr.mxu0 0.0
        %2384 = vmatpush1.msra.mxu0 %v2208
        %2385 = vmatprep.subr.mxu0 0.0
        %2386 = vmatpush1.msra.mxu0 %v2209
        %2387 = vmatprep.subr.mxu0 0.0
        %2388 = vmatpush1.msra.mxu0 %v2210
        %2389 = vmatprep.subr.mxu0 0.0
        %2390 = vmatpush1.msra.mxu0 %v2211
        %2391 = vmatprep.subr.mxu0 0.0
        %2392 = vmatpush1.msra.mxu0 %v2212
        %2393 = vmatprep.subr.mxu0 0.0
        %2394 = vmatpush1.msra.mxu0 %v2213
        %2395 = vmatprep.subr.mxu0 0.0
        %2396 = vmatpush1.msra.mxu0 %v2214
        %2397 = vmatprep.subr.mxu0 0.0
        %2398 = vmatpush1.msra.mxu0 %v2215
        %2399 = vmatprep.subr.mxu0 0.0
        %2400 = vmatpush1.msra.mxu0 %v2216
        %2401 = vmatprep.subr.mxu0 0.0
        %2402 = vmatpush1.msra.mxu0 %v2217
        %2403 = vmatprep.subr.mxu0 0.0
        %2404 = vmatpush1.msra.mxu0 %v2218
        %2405 = vmatprep.subr.mxu0 0.0
        %2406 = vmatpush1.msra.mxu0 %v2219
        %2407 = vmatprep.subr.mxu0 0.0
        %2408 = vmatpush1.msra.mxu0 %v2220
        %2409 = vmatprep.subr.mxu0 0.0
        %2410 = vmatpush1.msra.mxu0 %v2221
        %2411 = vmatprep.subr.mxu0 0.0
        %2412 = vmatpush1.msra.mxu0 %v2222
        %2413 = vmatprep.subr.mxu0 0.0
        %2414 = vmatpush1.msra.mxu0 %v2223
        %2415 = vmatprep.subr.mxu0 0.0
        %2416 = vmatpush1.msra.mxu0 %v2224
        %2417 = vmatprep.subr.mxu0 0.0
        %2418 = vmatpush1.msra.mxu0 %v2225
        %2419 = vmatprep.subr.mxu0 0.0
        %2420 = vmatpush1.msra.mxu0 %v2226
        %2421 = vmatprep.subr.mxu0 0.0
        %2422 = vmatpush1.msra.mxu0 %v2227
        %2423 = vmatprep.subr.mxu0 0.0
        %2424 = vmatpush1.msra.mxu0 %v2228
        %2425 = vmatprep.subr.mxu0 0.0
        %2426 = vmatpush1.msra.mxu0 %v2229
        %2427 = vmatprep.subr.mxu0 0.0
        %2428 = vmatpush1.msra.mxu0 %v2230
        %2429 = vmatprep.subr.mxu0 0.0
        %2430 = vmatpush1.msra.mxu0 %v2231
        %2431 = vmatprep.subr.mxu0 0.0
        %2432 = vmatpush1.msra.mxu0 %v2232
        %2433 = vmatprep.subr.mxu0 0.0
        %2434 = vmatpush1.msra.mxu0 %v2233
        %2435 = vmatprep.subr.mxu0 0.0
        %2436 = vmatpush1.msra.mxu0 %v2234
        %2437 = vmatprep.subr.mxu0 0.0
        %2438 = vmatpush1.msra.mxu0 %v2235
        %2439 = vmatprep.subr.mxu0 0.0
        %2440 = vmatpush1.msra.mxu0 %v2236
        %2441 = vmatprep.subr.mxu0 0.0
        %2442 = vmatpush1.msra.mxu0 %v2237
        %2443 = vmatprep.mubr.f32.mxu0 %v2304
        %2444 = vmatmul.mubr.f32.gmra.mrb[0].mxu0 %v2297
        %v2445 = vpop.f32.mrb[0].mxu0
        %v2446 = vadd.f32 %v2376, %v2445
        %v2447 = vpop.f32.mrb[0].mxu0
        %2448 = vdwg.mxu0
        %2449 = vst [vmem:[%s246] sm:$0xff] %v2446
        %s2450 = sand.u32 %s121, 1
        %s2451 = scalar_lea.sflag [#allocation4], %s2450
        %s2452 = sand.u32 %s121, 1
        %s2453 = smul.addr %s2452, 512
        %s2454 = scalar_lea.vmem [#allocation5], %s2453
        %s2455 = sand.u32 %s147, 1
        %s2456 = scalar_lea.sflag [#allocation7], %s2455
        %s2457 = sand.u32 %s147, 1
        %s2458 = smul.addr %s2457, 8
        %s2459 = scalar_lea.vmem [#allocation6], %s2458
        // Predicated region
        $region41: #{tpu_custom_call.1} parent=35 // pred_check
          %p2460 = pneg %p131
        $region42: #{tpu_custom_call.1} parent=35 // pred_check_branch
          %2462 = sbr.rel (%p2460) target = $region44
        $region43: #{tpu_custom_call.1} parent=35 // pred_region
          %s2463 = smul.u32 8, %s24
          %s2465 = ssub.s32 8192, 8192
          %2466 = vsyncadd %s2451, %s2465
          %s2467 = smul.addr %s2463, 8
          %s2468 = smul.addr %s2467, 128
          %s2469 = scalar_lea.hbm %s4, %s2468
          %s2470 = sshll.u32 %s2454, 4
          %s2471 = int_to_ptr.vmem [resolvable:$true] %s2470
          %2476 = dma.vmem_to_hbm [thread:$0]  %s2471, 8192, %s2469, %s2451, 512, 512, 32
        $region44: #{tpu_custom_call.1} parent=35 // pred_fallthru
          _
        // Predicated region
        $region45: #{tpu_custom_call.1} parent=35 // pred_check
          %p2477 = pneg %p157
        $region46: #{tpu_custom_call.1} parent=35 // pred_check_branch
          %2479 = sbr.rel (%p2477) target = $region48
        $region47: #{tpu_custom_call.1} parent=35 // pred_region
          %s2481 = ssub.s32 128, 128
          %2482 = vsyncadd %s2456, %s2481
          %s2483 = smul.addr %s24, 128
          %s2484 = scalar_lea.hbm %s5, %s2483
          %s2486 = sshll.u32 %s2459, 4
          %s2487 = int_to_ptr.vmem [resolvable:$true] %s2486
          %2489 = dma.vmem_to_hbm [thread:$0]  %s2487, 128, %s2484, %s2456
        $region48: #{tpu_custom_call.1} parent=35 // pred_fallthru
          _
      $region36: #{tpu_custom_call.1} parent=5 // pred_fallthru
        _
      %p2490 = scmp.le.s32.totalorder 2, %s19
      // Predicated region
      $region49: #{tpu_custom_call.1} parent=5 // pred_check
        %p2491 = pneg %p2490
      $region50: #{tpu_custom_call.1} parent=5 // pred_check_branch
        %2493 = sbr.rel (%p2491) target = $region52
      $region51: #{tpu_custom_call.1} parent=5 // pred_region
        %s2494 = ssub.s32 %s19, 2
        // Predicated region
        $region53: #{tpu_custom_call.1} parent=51 // pred_check
          %p2495 = pneg %p137
        $region54: #{tpu_custom_call.1} parent=51 // pred_check_branch
          %2497 = sbr.rel (%p2495) target = $region56
        $region55: #{tpu_custom_call.1} parent=51 // pred_region
          %s2498 = sand.u32 %s122, 1
          %s2499 = scalar_lea.sflag [#allocation4], %s2498
          %s2500 = sand.u32 %s122, 1
          %s2501 = smul.addr %s2500, 512
          %s2502 = scalar_lea.vmem [#allocation5], %s2501
          %2503 = dma.done %s2499, 8192
        $region56: #{tpu_custom_call.1} parent=51 // pred_fallthru
          _
        // Predicated region
        $region57: #{tpu_custom_call.1} parent=51 // pred_check
          %p2504 = pneg %p163
        $region58: #{tpu_custom_call.1} parent=51 // pred_check_branch
          %2506 = sbr.rel (%p2504) target = $region60
        $region59: #{tpu_custom_call.1} parent=51 // pred_region
          %s2507 = sand.u32 %s148, 1
          %s2508 = scalar_lea.sflag [#allocation7], %s2507
          %s2509 = sand.u32 %s148, 1
          %s2510 = smul.addr %s2509, 8
          %s2511 = scalar_lea.vmem [#allocation6], %s2510
          %2512 = dma.done %s2508, 128
        $region60: #{tpu_custom_call.1} parent=51 // pred_fallthru
          _
      $region52: #{tpu_custom_call.1} parent=5 // pred_fallthru
        _
    $region6: #{tpu_custom_call.1} parent=1 // loop_footer
      %s23 = sadd.s32 1, %s19
    $region7: #{tpu_custom_call.1} parent=1 // loop_footer_branch
      %18 = sbr.rel target = $region3
    $region8: #{tpu_custom_call.1} parent=1 // loop_exit
      _
    %2513 = vsyncpa [#allocation3], 1
    %s2514 = scalar_lea.sflag [#allocation3], 1
    %2515 = vsyncpa %s2514, 1
    %2516 = vsyncpa [#allocation4], 1
    %s2517 = scalar_lea.sflag [#allocation4], 1
    %2518 = vsyncpa %s2517, 1
    %2519 = vsyncpa [#allocation7], 1
    %s2520 = scalar_lea.sflag [#allocation7], 1
    %2521 = vsyncpa %s2520, 1

</llo_original>
